<compile_context>
chip_gen: v6e
topology: v6e:2x2x1
jax: 0.10.0
libtpu: 0.0.40
codegen_flags: <defaults>
</compile_context>

<pallas_src>
import functools

import jax
import jax.numpy as jnp
from jax.experimental import pallas as pl
from jax.experimental.pallas import tpu as pltpu

EMB_DIM = 16
COS_EPS = 1e-8            # torch.cosine_similarity eps


def _round_up(x, m):
    return ((x + m - 1) // m) * m


def youtube_dnn_kernel(feat_ref, items_ref, inv_ref, w_ref, b_ref, out_ref,
                       un_sc, l_sc, *, n_valid, tile_n):
    """One (batch-tile, N-tile) grid step.

    feat_ref : (TB, f_pad)       f32  zero-padded user-tower features
    items_ref: (16, TB, TILE_N)  bf16 candidate embeddings, emb-dim leading
    inv_ref  : (TB, TILE_N)      f32  per-candidate 1/max(||i||, eps)
    w_ref    : (f_pad, 16)       f32  folded MLP weight (VMEM resident)
    b_ref    : (1, 16)           f32  folded MLP bias   (VMEM resident)
    out_ref  : (TB, n_pad)       f32  softmax scores, VMEM-resident over N
    un_sc    : (TB, 16)          f32  L2-normalized user embedding scratch
    l_sc     : (TB, 1)           f32  running softmax denominator scratch
    """
    j = pl.program_id(1)

    @pl.when(j == 0)
    def _():
        # Folded user tower: one MXU pass (92->16, K zero-padded to 128),
        # then L2-normalize once per row (rsqrt only on a (TB, 1) vector).
        u = jnp.dot(feat_ref[...], w_ref[...],
                    preferred_element_type=jnp.float32) + b_ref[...]
        u_sq = jnp.sum(u * u, axis=1, keepdims=True)
        un_sc[...] = u * jax.lax.rsqrt(jnp.maximum(u_sq, COS_EPS))
        l_sc[...] = jnp.zeros_like(l_sc)

    un = un_sc[...]                                   # (TB, 16) f32

    # Cosine numerator: 16 contiguous (TB, TILE_N) slabs, f32 accumulation.
    # TODO(synk): check in the bundle dump that the (TB,1)->(TB,TILE_N)
    # broadcasts of un[:, d:d+1] stay off the VALU critical path.
    dots = un[:, 0:1] * items_ref[0].astype(jnp.float32)
    for d in range(1, EMB_DIM):
        dots = dots + un[:, d:d + 1] * items_ref[d].astype(jnp.float32)

    logits = dots * inv_ref[...]                      # cosine, in [-1, 1]

    if n_valid is not None:                           # only when N % tile != 0
        col = j * tile_n + jax.lax.broadcasted_iota(jnp.int32, logits.shape, 1)
        logits = jnp.where(col < n_valid, logits, jnp.float32(-1e30))

    # Softmax without a running max: |logits| <= 1, so exp cannot overflow.
    e = jnp.exp(logits)                               # masked columns -> 0
    l_sc[...] = l_sc[...] + jnp.sum(e, axis=-1, keepdims=True)
    start = pl.multiple_of(j * tile_n, tile_n)
    out_ref[:, pl.ds(start, tile_n)] = e

    @pl.when(j == pl.num_programs(1) - 1)
    def _():
        out_ref[...] = out_ref[...] * pl.reciprocal(l_sc[...], approx=False)


@functools.partial(jax.jit, static_argnames=("tile_n",))
def youtube_dnn_forward(params, disc, cont, history, items, *, tile_n=512):
    """Embedding gathers + MLP folding in XLA glue; the hot matmul / cosine /
    softmax path over the candidate set runs in the Pallas kernel."""
    item_tab = params["item_emb"].astype(jnp.float32)

    # device/OS embeddings exist in the module but are unused in the concat,
    # matching the PyTorch forward (computed then discarded).
    userId_e = jnp.take(params["user_emb"], disc[:, 0], axis=0)          # (B, 16)
    prov_e = jnp.take(params["prov_emb"], disc[:, 3], axis=0)            # (B, 16)
    city_e = jnp.take(params["city_emb"], disc[:, 4], axis=0)            # (B, 16)
    hist_e = jnp.take(item_tab, history, axis=0).mean(axis=1)            # (B, 16)
    feat = jnp.concatenate(
        [userId_e, prov_e, city_e, hist_e, cont], axis=1).astype(jnp.float32)

    # Fold the activation-free 3-layer MLP into a single (92 -> 16) matmul.
    w23 = params["w2"] @ params["w3"]                                    # (128, 16)
    w_fold = params["w1"] @ w23                                          # (92, 16)
    b_fold = (params["b1"] @ w23 + params["b2"] @ params["w3"]
              + params["b3"]).astype(jnp.float32)                        # (1, 16)

    B, N = items.shape
    f_in = feat.shape[1]

    # ---- tiling: keep >=2 batch tiles when possible (v7x has 2 TCs) --------
    if B >= 256:
        tb = 128
    else:
        tb = min(128, max(8, _round_up((B + 1) // 2, 8)))
    b_pad = _round_up(B, tb)

    tile_n = max(128, _round_up(min(tile_n, _round_up(N, 128)), 128))
    n_pad = _round_up(N, tile_n)
    f_pad = _round_up(f_in, 128)                                         # 92 -> 128

    feat_p = jnp.pad(feat, ((0, b_pad - B), (0, f_pad - f_in)))
    w_p = jnp.pad(w_fold, ((0, f_pad - f_in), (0, 0))).astype(jnp.float32)

    # ---- candidate stream: pad the *indices*, gather straight into the
    # (16, B, N) bf16 layout, and gather precomputed per-item inverse norms.
    # Padded entries use index 0 (the padding_idx row, all zeros).
    # TODO(synk): when item_tab fits VMEM, move this gather inside the kernel
    # (VMEM-resident table + int32 index blocks) to cut the items HBM stream
    # from ~36 B/candidate to 4 B/candidate.
    idx_p = jnp.pad(items.astype(jnp.int32), ((0, b_pad - B), (0, n_pad - N)))
    tab_t_bf = item_tab.astype(jnp.bfloat16).T                           # (16, V)
    items_p = jnp.take(tab_t_bf, idx_p, axis=1)                          # (16, b_pad, n_pad)
    item_inv = jax.lax.rsqrt(
        jnp.maximum(jnp.sum(item_tab * item_tab, axis=1), COS_EPS))      # (V,)
    inv_p = jnp.take(item_inv, idx_p, axis=0)                            # (b_pad, n_pad)

    n_valid = None if n_pad == N else N
    kernel = functools.partial(youtube_dnn_kernel, n_valid=n_valid, tile_n=tile_n)

    # VMEM budget: double-buffered streams + resident output row block.
    vmem_bytes = (2 * EMB_DIM * tb * tile_n * 2          # items (bf16)
                  + 2 * tb * tile_n * 4                  # inverse norms
                  + 2 * tb * f_pad * 4                   # features
                  + 2 * tb * n_pad * 4                   # resident output
                  + 2 * (f_pad + 1) * EMB_DIM * 4        # weight / bias
                  + tb * (EMB_DIM + 1) * 4               # scratch
                  + (4 << 20))                           # compiler slack
    vmem_limit = int(min(max(vmem_bytes, 32 << 20), 64 << 20))

    out = pl.pallas_call(
        kernel,
        out_shape=jax.ShapeDtypeStruct((b_pad, n_pad), jnp.float32),
        grid_spec=pltpu.PrefetchScalarGridSpec(
            num_scalar_prefetch=0,
            grid=(b_pad // tb, n_pad // tile_n),
            in_specs=[
                pl.BlockSpec((tb, f_pad), lambda i, j: (i, 0)),
                pl.BlockSpec((EMB_DIM, tb, tile_n), lambda i, j: (0, i, j)),
                pl.BlockSpec((tb, tile_n), lambda i, j: (i, j)),
                pl.BlockSpec((f_pad, EMB_DIM), lambda i, j: (0, 0)),   # resident
                pl.BlockSpec((1, EMB_DIM), lambda i, j: (0, 0)),       # resident
            ],
            out_specs=pl.BlockSpec((tb, n_pad), lambda i, j: (i, 0)),
            scratch_shapes=[pltpu.VMEM((tb, EMB_DIM), jnp.float32),
                            pltpu.VMEM((tb, 1), jnp.float32)],
        ),
        compiler_params=pltpu.CompilerParams(
            dimension_semantics=("parallel", "arbitrary"),
            vmem_limit_bytes=vmem_limit),
    )(feat_p, items_p, inv_p, w_p, b_fold)

    # TODO(synk): for candidate sets where the resident (TB, n_pad) f32 output
    # block stresses VMEM (n_pad >~ 32k on v7x), switch the finalize to a
    # per-N-tile rescale pass instead of a single resident row block.
    return out[:B, :N]


def init_params(key, item_num, user_num, city_num, province_num,
                device_num, OS_num, embedding_dim=EMB_DIM):
    ks = jax.random.split(key, 12)
    item_emb = 0.1 * jax.random.normal(ks[0], (item_num, embedding_dim), jnp.float32)
    item_emb = item_emb.at[0].set(0.0)  # padding_idx=0 row is zero
    params = {
        "item_emb": item_emb,
        "user_emb": 0.1 * jax.random.normal(ks[1], (user_num, embedding_dim), jnp.float32),
        "city_emb": 0.1 * jax.random.normal(ks[2], (city_num, embedding_dim), jnp.float32),
        "prov_emb": 0.1 * jax.random.normal(ks[3], (province_num, embedding_dim), jnp.float32),
        "dev_emb": 0.1 * jax.random.normal(ks[4], (device_num, embedding_dim), jnp.float32),
        "os_emb": 0.1 * jax.random.normal(ks[5], (OS_num, embedding_dim), jnp.float32),
        # Linear weights stored as (in, out) so everything computes x @ W + b.
        "w1": 0.1 * jax.random.normal(ks[6], (92, 128), jnp.float32),
        "b1": 0.01 * jax.random.normal(ks[7], (1, 128), jnp.float32),
        "w2": 0.1 * jax.random.normal(ks[8], (128, 32), jnp.float32),
        "b2": 0.01 * jax.random.normal(ks[9], (1, 32), jnp.float32),
        "w3": 0.1 * jax.random.normal(ks[10], (32, 16), jnp.float32),
        "b3": 0.01 * jax.random.normal(ks[11], (1, 16), jnp.float32),
    }
    return params


def reference_forward(params, disc, cont, history, items):
    """Pure-JAX f32 reference (unfolded MLP, torch.cosine_similarity semantics)."""
    userId_e = params["user_emb"][disc[:, 0]]
    prov_e = params["prov_emb"][disc[:, 3]]
    city_e = params["city_emb"][disc[:, 4]]
    hist_e = params["item_emb"][history].mean(axis=1)
    feat = jnp.concatenate([userId_e, prov_e, city_e, hist_e, cont], axis=1)
    u = feat @ params["w1"] + params["b1"]
    u = u @ params["w2"] + params["b2"]
    u = u @ params["w3"] + params["b3"]
    item_e = params["item_emb"][items]
    w12 = jnp.einsum("bd,bnd->bn", u, item_e)
    w1s = jnp.sum(u * u, axis=-1, keepdims=True)
    w2s = jnp.sum(item_e * item_e, axis=-1)
    logits = w12 / jnp.sqrt(jnp.maximum(w1s * w2s, COS_EPS * COS_EPS))
    return jax.nn.softmax(logits, axis=-1)


if __name__ == "__main__":
    key = jax.random.PRNGKey(0)
    p_key, d_key = jax.random.split(key)

    item_num, user_num, city_num = 50, 20, 10
    province_num, device_num, OS_num = 8, 5, 3
    # B=20 -> two batch tiles of 16; N=200 with tile_n=128 -> two N tiles
    # (exercises batch padding, column masking, and the online normalization).
    B, L, N, CONT = 20, 8, 200, 28

    params = init_params(p_key, item_num, user_num, city_num,
                         province_num, device_num, OS_num)

    dks = jax.random.split(d_key, 8)
    disc = jnp.stack([
        jax.random.randint(dks[0], (B,), 0, user_num),
        jax.random.randint(dks[1], (B,), 0, device_num),
        jax.random.randint(dks[2], (B,), 0, OS_num),
        jax.random.randint(dks[3], (B,), 0, province_num),
        jax.random.randint(dks[4], (B,), 0, city_num),
    ], axis=1).astype(jnp.int32)
    cont = jax.random.normal(dks[5], (B, CONT), jnp.float32)
    history = jax.random.randint(dks[6], (B, L), 1, item_num).astype(jnp.int32)
    items = jax.random.randint(dks[7], (B, N), 1, item_num).astype(jnp.int32)

    scores = jax.block_until_ready(
        youtube_dnn_forward(params, disc, cont, history, items, tile_n=128))
    ref = reference_forward(params, disc, cont, history, items)

    assert scores.shape == (B, N)
    # Tolerances deliberately loosened vs. v2: the candidate embeddings are
    # streamed in bf16 (per perf review), which bounds per-logit error ~2e-3.
    assert jnp.allclose(scores, ref, atol=1e-3, rtol=5e-2), \
        float(jnp.max(jnp.abs(scores - ref)))
    assert jnp.allclose(scores.sum(axis=-1), 1.0, atol=1e-5)
    print("KERNEL_OK")
</pallas_src>

<mosaic_0001>
module attributes {stable_mosaic.version = 11 : i64} {
  func.func @youtube_dnn_kernel(%arg0: i32, %arg1: i32, %arg2: memref<16x128xf32, #tpu.memory_space<vmem>>, %arg3: memref<16x16x128xbf16, #tpu.memory_space<vmem>>, %arg4: memref<16x128xf32, #tpu.memory_space<vmem>>, %arg5: memref<128x16xf32, #tpu.memory_space<vmem>>, %arg6: memref<1x16xf32, #tpu.memory_space<vmem>>, %arg7: memref<16x256xf32, #tpu.memory_space<vmem>>, %arg8: memref<16x16xf32, #tpu.memory_space<vmem>>, %arg9: memref<16x1xf32, #tpu.memory_space<vmem>>) attributes {dimension_semantics = [#tpu.dimension_semantics<parallel>, #tpu.dimension_semantics<arbitrary>], iteration_bounds = array<i64: 2, 2>, scalar_prefetch = 0 : i64, scratch_operands = 2 : i64, tpu.core_type = #tpu.core_type<tc>, window_params = [{transform_indices = @transform_0, window_bounds = array<i64: 16, 128>}, {transform_indices = @transform_1, window_bounds = array<i64: 16, 16, 128>}, {transform_indices = @transform_2, window_bounds = array<i64: 16, 128>}, {pipeline_mode = #tpu.pipeline_mode<synchronous>, transform_indices = @transform_3, window_bounds = array<i64: 128, 16>}, {pipeline_mode = #tpu.pipeline_mode<synchronous>, transform_indices = @transform_4, window_bounds = array<i64: 1, 16>}, {transform_indices = @transform_5, window_bounds = array<i64: 16, 256>}]} {
    %c0_i32 = arith.constant 0 : i32
    %0 = arith.cmpi eq, %arg1, %c0_i32 : i32
    %1 = arith.extui %0 : i1 to i32
    %c0_i32_0 = arith.constant 0 : i32
    %2 = arith.cmpi ne, %1, %c0_i32_0 : i32
    scf.if %2 {
      %c0_45 = arith.constant 0 : index
      %c0_46 = arith.constant 0 : index
      %138 = vector.load %arg2[%c0_45, %c0_46] : memref<16x128xf32, #tpu.memory_space<vmem>>, vector<16x128xf32>
      %c0_47 = arith.constant 0 : index
      %c0_48 = arith.constant 0 : index
      %139 = vector.load %arg5[%c0_47, %c0_48] : memref<128x16xf32, #tpu.memory_space<vmem>>, vector<128x16xf32>
      %cst_49 = arith.constant dense<0.000000e+00> : vector<16x16xf32>
      %140 = tpu.matmul %138, %139, %cst_49 {dimension_numbers = #tpu.dot_dimension_numbers<[1], [0], [0], [1], [0, 0, 1, 1], [], []>} : vector<16x128xf32>, vector<128x16xf32>, vector<16x16xf32> -> vector<16x16xf32>
      %c0_50 = arith.constant 0 : index
      %c0_51 = arith.constant 0 : index
      %141 = vector.load %arg6[%c0_50, %c0_51] : memref<1x16xf32, #tpu.memory_space<vmem>>, vector<1x16xf32>
      %142 = vector.broadcast %141 : vector<1x16xf32> to vector<16x16xf32>
      %143 = arith.addf %140, %142 : vector<16x16xf32>
      %144 = arith.mulf %143, %143 : vector<16x16xf32>
      %cst_52 = arith.constant dense<0.000000e+00> : vector<16xf32>
      %145 = vector.multi_reduction <add>, %144, %cst_52 [1] : vector<16x16xf32> to vector<16xf32>
      %146 = vector.shape_cast %145 : vector<16xf32> to vector<16x1xf32>
      %cst_53 = arith.constant 9.99999993E-9 : f32
      %147 = vector.broadcast %cst_53 : f32 to vector<16x1xf32>
      %148 = arith.maximumf %146, %147 : vector<16x1xf32>
      %149 = math.rsqrt %148 : vector<16x1xf32>
      %150 = vector.broadcast %149 : vector<16x1xf32> to vector<16x16xf32>
      %151 = arith.mulf %143, %150 : vector<16x16xf32>
      %c0_54 = arith.constant 0 : index
      %c0_55 = arith.constant 0 : index
      %152 = vector.load %arg8[%c0_54, %c0_55] : memref<16x16xf32, #tpu.memory_space<vmem>>, vector<16x16xf32>
      tpu.vector_store %arg8[%c0_54, %c0_55], %151 {strides = array<i32>} : memref<16x16xf32, #tpu.memory_space<vmem>>, vector<16x16xf32>,
      %cst_56 = arith.constant 0.000000e+00 : f32
      %153 = vector.broadcast %cst_56 : f32 to vector<16x1xf32>
      %c0_57 = arith.constant 0 : index
      %c0_58 = arith.constant 0 : index
      %154 = vector.load %arg9[%c0_57, %c0_58] : memref<16x1xf32, #tpu.memory_space<vmem>>, vector<16x1xf32>
      tpu.vector_store %arg9[%c0_57, %c0_58], %153 {strides = array<i32>} : memref<16x1xf32, #tpu.memory_space<vmem>>, vector<16x1xf32>,
    } else {
    }
    %c0 = arith.constant 0 : index
    %c0_1 = arith.constant 0 : index
    %3 = vector.load %arg8[%c0, %c0_1] : memref<16x16xf32, #tpu.memory_space<vmem>>, vector<16x16xf32>
    %4 = vector.extract_strided_slice %3 {offsets = [0, 0], sizes = [16, 1], strides = [1, 1]} : vector<16x16xf32> to vector<16x1xf32>
    %c0_2 = arith.constant 0 : index
    %c0_3 = arith.constant 0 : index
    %c0_4 = arith.constant 0 : index
    %5 = vector.load %arg3[%c0_2, %c0_3, %c0_4] : memref<16x16x128xbf16, #tpu.memory_space<vmem>>, vector<1x16x128xbf16>
    %6 = vector.shape_cast %5 : vector<1x16x128xbf16> to vector<16x128xbf16>
    %7 = arith.extf %6 : vector<16x128xbf16> to vector<16x128xf32>
    %8 = vector.broadcast %4 : vector<16x1xf32> to vector<16x128xf32>
    %9 = arith.mulf %8, %7 : vector<16x128xf32>
    %10 = vector.extract_strided_slice %3 {offsets = [0, 1], sizes = [16, 1], strides = [1, 1]} : vector<16x16xf32> to vector<16x1xf32>
    %c1 = arith.constant 1 : index
    %c0_5 = arith.constant 0 : index
    %c0_6 = arith.constant 0 : index
    %11 = vector.load %arg3[%c1, %c0_5, %c0_6] : memref<16x16x128xbf16, #tpu.memory_space<vmem>>, vector<1x16x128xbf16>
    %12 = vector.shape_cast %11 : vector<1x16x128xbf16> to vector<16x128xbf16>
    %13 = arith.extf %12 : vector<16x128xbf16> to vector<16x128xf32>
    %14 = vector.broadcast %10 : vector<16x1xf32> to vector<16x128xf32>
    %15 = arith.mulf %14, %13 : vector<16x128xf32>
    %16 = arith.addf %9, %15 : vector<16x128xf32>
    %17 = vector.extract_strided_slice %3 {offsets = [0, 2], sizes = [16, 1], strides = [1, 1]} : vector<16x16xf32> to vector<16x1xf32>
    %c2 = arith.constant 2 : index
    %c0_7 = arith.constant 0 : index
    %c0_8 = arith.constant 0 : index
    %18 = vector.load %arg3[%c2, %c0_7, %c0_8] : memref<16x16x128xbf16, #tpu.memory_space<vmem>>, vector<1x16x128xbf16>
    %19 = vector.shape_cast %18 : vector<1x16x128xbf16> to vector<16x128xbf16>
    %20 = arith.extf %19 : vector<16x128xbf16> to vector<16x128xf32>
    %21 = vector.broadcast %17 : vector<16x1xf32> to vector<16x128xf32>
    %22 = arith.mulf %21, %20 : vector<16x128xf32>
    %23 = arith.addf %16, %22 : vector<16x128xf32>
    %24 = vector.extract_strided_slice %3 {offsets = [0, 3], sizes = [16, 1], strides = [1, 1]} : vector<16x16xf32> to vector<16x1xf32>
    %c3 = arith.constant 3 : index
    %c0_9 = arith.constant 0 : index
    %c0_10 = arith.constant 0 : index
    %25 = vector.load %arg3[%c3, %c0_9, %c0_10] : memref<16x16x128xbf16, #tpu.memory_space<vmem>>, vector<1x16x128xbf16>
    %26 = vector.shape_cast %25 : vector<1x16x128xbf16> to vector<16x128xbf16>
    %27 = arith.extf %26 : vector<16x128xbf16> to vector<16x128xf32>
    %28 = vector.broadcast %24 : vector<16x1xf32> to vector<16x128xf32>
    %29 = arith.mulf %28, %27 : vector<16x128xf32>
    %30 = arith.addf %23, %29 : vector<16x128xf32>
    %31 = vector.extract_strided_slice %3 {offsets = [0, 4], sizes = [16, 1], strides = [1, 1]} : vector<16x16xf32> to vector<16x1xf32>
    %c4 = arith.constant 4 : index
    %c0_11 = arith.constant 0 : index
    %c0_12 = arith.constant 0 : index
    %32 = vector.load %arg3[%c4, %c0_11, %c0_12] : memref<16x16x128xbf16, #tpu.memory_space<vmem>>, vector<1x16x128xbf16>
    %33 = vector.shape_cast %32 : vector<1x16x128xbf16> to vector<16x128xbf16>
    %34 = arith.extf %33 : vector<16x128xbf16> to vector<16x128xf32>
    %35 = vector.broadcast %31 : vector<16x1xf32> to vector<16x128xf32>
    %36 = arith.mulf %35, %34 : vector<16x128xf32>
    %37 = arith.addf %30, %36 : vector<16x128xf32>
    %38 = vector.extract_strided_slice %3 {offsets = [0, 5], sizes = [16, 1], strides = [1, 1]} : vector<16x16xf32> to vector<16x1xf32>
    %c5 = arith.constant 5 : index
    %c0_13 = arith.constant 0 : index
    %c0_14 = arith.constant 0 : index
    %39 = vector.load %arg3[%c5, %c0_13, %c0_14] : memref<16x16x128xbf16, #tpu.memory_space<vmem>>, vector<1x16x128xbf16>
    %40 = vector.shape_cast %39 : vector<1x16x128xbf16> to vector<16x128xbf16>
    %41 = arith.extf %40 : vector<16x128xbf16> to vector<16x128xf32>
    %42 = vector.broadcast %38 : vector<16x1xf32> to vector<16x128xf32>
    %43 = arith.mulf %42, %41 : vector<16x128xf32>
    %44 = arith.addf %37, %43 : vector<16x128xf32>
    %45 = vector.extract_strided_slice %3 {offsets = [0, 6], sizes = [16, 1], strides = [1, 1]} : vector<16x16xf32> to vector<16x1xf32>
    %c6 = arith.constant 6 : index
    %c0_15 = arith.constant 0 : index
    %c0_16 = arith.constant 0 : index
    %46 = vector.load %arg3[%c6, %c0_15, %c0_16] : memref<16x16x128xbf16, #tpu.memory_space<vmem>>, vector<1x16x128xbf16>
    %47 = vector.shape_cast %46 : vector<1x16x128xbf16> to vector<16x128xbf16>
    %48 = arith.extf %47 : vector<16x128xbf16> to vector<16x128xf32>
    %49 = vector.broadcast %45 : vector<16x1xf32> to vector<16x128xf32>
    %50 = arith.mulf %49, %48 : vector<16x128xf32>
    %51 = arith.addf %44, %50 : vector<16x128xf32>
    %52 = vector.extract_strided_slice %3 {offsets = [0, 7], sizes = [16, 1], strides = [1, 1]} : vector<16x16xf32> to vector<16x1xf32>
    %c7 = arith.constant 7 : index
    %c0_17 = arith.constant 0 : index
    %c0_18 = arith.constant 0 : index
    %53 = vector.load %arg3[%c7, %c0_17, %c0_18] : memref<16x16x128xbf16, #tpu.memory_space<vmem>>, vector<1x16x128xbf16>
    %54 = vector.shape_cast %53 : vector<1x16x128xbf16> to vector<16x128xbf16>
    %55 = arith.extf %54 : vector<16x128xbf16> to vector<16x128xf32>
    %56 = vector.broadcast %52 : vector<16x1xf32> to vector<16x128xf32>
    %57 = arith.mulf %56, %55 : vector<16x128xf32>
    %58 = arith.addf %51, %57 : vector<16x128xf32>
    %59 = vector.extract_strided_slice %3 {offsets = [0, 8], sizes = [16, 1], strides = [1, 1]} : vector<16x16xf32> to vector<16x1xf32>
    %c8 = arith.constant 8 : index
    %c0_19 = arith.constant 0 : index
    %c0_20 = arith.constant 0 : index
    %60 = vector.load %arg3[%c8, %c0_19, %c0_20] : memref<16x16x128xbf16, #tpu.memory_space<vmem>>, vector<1x16x128xbf16>
    %61 = vector.shape_cast %60 : vector<1x16x128xbf16> to vector<16x128xbf16>
    %62 = arith.extf %61 : vector<16x128xbf16> to vector<16x128xf32>
    %63 = vector.broadcast %59 : vector<16x1xf32> to vector<16x128xf32>
    %64 = arith.mulf %63, %62 : vector<16x128xf32>
    %65 = arith.addf %58, %64 : vector<16x128xf32>
    %66 = vector.extract_strided_slice %3 {offsets = [0, 9], sizes = [16, 1], strides = [1, 1]} : vector<16x16xf32> to vector<16x1xf32>
    %c9 = arith.constant 9 : index
    %c0_21 = arith.constant 0 : index
    %c0_22 = arith.constant 0 : index
    %67 = vector.load %arg3[%c9, %c0_21, %c0_22] : memref<16x16x128xbf16, #tpu.memory_space<vmem>>, vector<1x16x128xbf16>
    %68 = vector.shape_cast %67 : vector<1x16x128xbf16> to vector<16x128xbf16>
    %69 = arith.extf %68 : vector<16x128xbf16> to vector<16x128xf32>
    %70 = vector.broadcast %66 : vector<16x1xf32> to vector<16x128xf32>
    %71 = arith.mulf %70, %69 : vector<16x128xf32>
    %72 = arith.addf %65, %71 : vector<16x128xf32>
    %73 = vector.extract_strided_slice %3 {offsets = [0, 10], sizes = [16, 1], strides = [1, 1]} : vector<16x16xf32> to vector<16x1xf32>
    %c10 = arith.constant 10 : index
    %c0_23 = arith.constant 0 : index
    %c0_24 = arith.constant 0 : index
    %74 = vector.load %arg3[%c10, %c0_23, %c0_24] : memref<16x16x128xbf16, #tpu.memory_space<vmem>>, vector<1x16x128xbf16>
    %75 = vector.shape_cast %74 : vector<1x16x128xbf16> to vector<16x128xbf16>
    %76 = arith.extf %75 : vector<16x128xbf16> to vector<16x128xf32>
    %77 = vector.broadcast %73 : vector<16x1xf32> to vector<16x128xf32>
    %78 = arith.mulf %77, %76 : vector<16x128xf32>
    %79 = arith.addf %72, %78 : vector<16x128xf32>
    %80 = vector.extract_strided_slice %3 {offsets = [0, 11], sizes = [16, 1], strides = [1, 1]} : vector<16x16xf32> to vector<16x1xf32>
    %c11 = arith.constant 11 : index
    %c0_25 = arith.constant 0 : index
    %c0_26 = arith.constant 0 : index
    %81 = vector.load %arg3[%c11, %c0_25, %c0_26] : memref<16x16x128xbf16, #tpu.memory_space<vmem>>, vector<1x16x128xbf16>
    %82 = vector.shape_cast %81 : vector<1x16x128xbf16> to vector<16x128xbf16>
    %83 = arith.extf %82 : vector<16x128xbf16> to vector<16x128xf32>
    %84 = vector.broadcast %80 : vector<16x1xf32> to vector<16x128xf32>
    %85 = arith.mulf %84, %83 : vector<16x128xf32>
    %86 = arith.addf %79, %85 : vector<16x128xf32>
    %87 = vector.extract_strided_slice %3 {offsets = [0, 12], sizes = [16, 1], strides = [1, 1]} : vector<16x16xf32> to vector<16x1xf32>
    %c12 = arith.constant 12 : index
    %c0_27 = arith.constant 0 : index
    %c0_28 = arith.constant 0 : index
    %88 = vector.load %arg3[%c12, %c0_27, %c0_28] : memref<16x16x128xbf16, #tpu.memory_space<vmem>>, vector<1x16x128xbf16>
    %89 = vector.shape_cast %88 : vector<1x16x128xbf16> to vector<16x128xbf16>
    %90 = arith.extf %89 : vector<16x128xbf16> to vector<16x128xf32>
    %91 = vector.broadcast %87 : vector<16x1xf32> to vector<16x128xf32>
    %92 = arith.mulf %91, %90 : vector<16x128xf32>
    %93 = arith.addf %86, %92 : vector<16x128xf32>
    %94 = vector.extract_strided_slice %3 {offsets = [0, 13], sizes = [16, 1], strides = [1, 1]} : vector<16x16xf32> to vector<16x1xf32>
    %c13 = arith.constant 13 : index
    %c0_29 = arith.constant 0 : index
    %c0_30 = arith.constant 0 : index
    %95 = vector.load %arg3[%c13, %c0_29, %c0_30] : memref<16x16x128xbf16, #tpu.memory_space<vmem>>, vector<1x16x128xbf16>
    %96 = vector.shape_cast %95 : vector<1x16x128xbf16> to vector<16x128xbf16>
    %97 = arith.extf %96 : vector<16x128xbf16> to vector<16x128xf32>
    %98 = vector.broadcast %94 : vector<16x1xf32> to vector<16x128xf32>
    %99 = arith.mulf %98, %97 : vector<16x128xf32>
    %100 = arith.addf %93, %99 : vector<16x128xf32>
    %101 = vector.extract_strided_slice %3 {offsets = [0, 14], sizes = [16, 1], strides = [1, 1]} : vector<16x16xf32> to vector<16x1xf32>
    %c14 = arith.constant 14 : index
    %c0_31 = arith.constant 0 : index
    %c0_32 = arith.constant 0 : index
    %102 = vector.load %arg3[%c14, %c0_31, %c0_32] : memref<16x16x128xbf16, #tpu.memory_space<vmem>>, vector<1x16x128xbf16>
    %103 = vector.shape_cast %102 : vector<1x16x128xbf16> to vector<16x128xbf16>
    %104 = arith.extf %103 : vector<16x128xbf16> to vector<16x128xf32>
    %105 = vector.broadcast %101 : vector<16x1xf32> to vector<16x128xf32>
    %106 = arith.mulf %105, %104 : vector<16x128xf32>
    %107 = arith.addf %100, %106 : vector<16x128xf32>
    %108 = vector.extract_strided_slice %3 {offsets = [0, 15], sizes = [16, 1], strides = [1, 1]} : vector<16x16xf32> to vector<16x1xf32>
    %c15 = arith.constant 15 : index
    %c0_33 = arith.constant 0 : index
    %c0_34 = arith.constant 0 : index
    %109 = vector.load %arg3[%c15, %c0_33, %c0_34] : memref<16x16x128xbf16, #tpu.memory_space<vmem>>, vector<1x16x128xbf16>
    %110 = vector.shape_cast %109 : vector<1x16x128xbf16> to vector<16x128xbf16>
    %111 = arith.extf %110 : vector<16x128xbf16> to vector<16x128xf32>
    %112 = vector.broadcast %108 : vector<16x1xf32> to vector<16x128xf32>
    %113 = arith.mulf %112, %111 : vector<16x128xf32>
    %114 = arith.addf %107, %113 : vector<16x128xf32>
    %c0_35 = arith.constant 0 : index
    %c0_36 = arith.constant 0 : index
    %115 = vector.load %arg4[%c0_35, %c0_36] : memref<16x128xf32, #tpu.memory_space<vmem>>, vector<16x128xf32>
    %116 = arith.mulf %114, %115 : vector<16x128xf32>
    %c128_i32 = arith.constant 128 : i32
    %117 = arith.muli %arg1, %c128_i32 : i32
    %118 = tpu.iota {dimensions = array<i32: 1>} : vector<16x128xi32>
    %119 = vector.broadcast %117 : i32 to vector<16x128xi32>
    %120 = arith.addi %119, %118 : vector<16x128xi32>
    %c200_i32 = arith.constant 200 : i32
    %121 = vector.broadcast %c200_i32 : i32 to vector<16x128xi32>
    %122 = arith.cmpi slt, %120, %121 : vector<16x128xi32>
    %cst = arith.constant -1.000000e+30 : f32
    %123 = vector.broadcast %cst : f32 to vector<16x128xf32>
    %124 = arith.select %122, %116, %123 : vector<16x128xi1>, vector<16x128xf32>
    %125 = math.exp %124 : vector<16x128xf32>
    %c0_37 = arith.constant 0 : index
    %c0_38 = arith.constant 0 : index
    %126 = vector.load %arg9[%c0_37, %c0_38] : memref<16x1xf32, #tpu.memory_space<vmem>>, vector<16x1xf32>
    %cst_39 = arith.constant dense<0.000000e+00> : vector<16xf32>
    %127 = vector.multi_reduction <add>, %125, %cst_39 [1] : vector<16x128xf32> to vector<16xf32>
    %128 = vector.shape_cast %127 : vector<16xf32> to vector<16x1xf32>
    %129 = arith.addf %126, %128 : vector<16x1xf32>
    %c0_40 = arith.constant 0 : index
    %c0_41 = arith.constant 0 : index
    %130 = vector.load %arg9[%c0_40, %c0_41] : memref<16x1xf32, #tpu.memory_space<vmem>>, vector<16x1xf32>
    tpu.vector_store %arg9[%c0_40, %c0_41], %129 {strides = array<i32>} : memref<16x1xf32, #tpu.memory_space<vmem>>, vector<16x1xf32>,
    %c128_i32_42 = arith.constant 128 : i32
    %131 = arith.muli %arg1, %c128_i32_42 : i32
    %132 = tpu.assume_multiple %131, 128 : i32
    %c0_43 = arith.constant 0 : index
    %133 = arith.index_cast %132 : i32 to index
    %134 = vector.load %arg7[%c0_43, %133] : memref<16x256xf32, #tpu.memory_space<vmem>>, vector<16x128xf32>
    tpu.vector_store %arg7[%c0_43, %133], %125 {strides = array<i32>} : memref<16x256xf32, #tpu.memory_space<vmem>>, vector<16x128xf32>,
    %c1_i32 = arith.constant 1 : i32
    %135 = arith.cmpi eq, %arg1, %c1_i32 : i32
    %136 = arith.extui %135 : i1 to i32
    %c0_i32_44 = arith.constant 0 : i32
    %137 = arith.cmpi ne, %136, %c0_i32_44 : i32
    scf.if %137 {
      %c0_45 = arith.constant 0 : index
      %c0_46 = arith.constant 0 : index
      %138 = vector.load %arg7[%c0_45, %c0_46] : memref<16x256xf32, #tpu.memory_space<vmem>>, vector<16x256xf32>
      %c0_47 = arith.constant 0 : index
      %c0_48 = arith.constant 0 : index
      %139 = vector.load %arg9[%c0_47, %c0_48] : memref<16x1xf32, #tpu.memory_space<vmem>>, vector<16x1xf32>
      %140 = tpu.reciprocal %139 : vector<16x1xf32> -> vector<16x1xf32>
      %141 = vector.broadcast %140 : vector<16x1xf32> to vector<16x256xf32>
      %142 = arith.mulf %138, %141 : vector<16x256xf32>
      %c0_49 = arith.constant 0 : index
      %c0_50 = arith.constant 0 : index
      %143 = vector.load %arg7[%c0_49, %c0_50] : memref<16x256xf32, #tpu.memory_space<vmem>>, vector<16x256xf32>
      tpu.vector_store %arg7[%c0_49, %c0_50], %142 {strides = array<i32>} : memref<16x256xf32, #tpu.memory_space<vmem>>, vector<16x256xf32>,
    } else {
    }
    return
  }
  func.func @transform_0(%arg0: i32, %arg1: i32) -> (i32, i32) {
    %c0_i32 = arith.constant 0 : i32
    %c0_i32_0 = arith.constant 0 : i32
    return %arg0, %c0_i32 : i32, i32
  }
  func.func @transform_1(%arg0: i32, %arg1: i32) -> (i32, i32, i32) {
    %c0_i32 = arith.constant 0 : i32
    %c0_i32_0 = arith.constant 0 : i32
    return %c0_i32, %arg0, %arg1 : i32, i32, i32
  }
  func.func @transform_2(%arg0: i32, %arg1: i32) -> (i32, i32) {
    %c0_i32 = arith.constant 0 : i32
    return %arg0, %arg1 : i32, i32
  }
  func.func @transform_3(%arg0: i32, %arg1: i32) -> (i32, i32) {
    %c0_i32 = arith.constant 0 : i32
    %c0_i32_0 = arith.constant 0 : i32
    %c0_i32_1 = arith.constant 0 : i32
    return %c0_i32, %c0_i32_0 : i32, i32
  }
  func.func @transform_4(%arg0: i32, %arg1: i32) -> (i32, i32) {
    %c0_i32 = arith.constant 0 : i32
    %c0_i32_0 = arith.constant 0 : i32
    %c0_i32_1 = arith.constant 0 : i32
    return %c0_i32, %c0_i32_0 : i32, i32
  }
  func.func @transform_5(%arg0: i32, %arg1: i32) -> (i32, i32) {
    %c0_i32 = arith.constant 0 : i32
    %c0_i32_0 = arith.constant 0 : i32
    return %arg0, %c0_i32 : i32, i32
  }
}

</mosaic_0001>

<llo_original>
// kernel: youtube_dnn_forward.1
$region0: #{youtube_dnn_forward.1}
  #allocation0 [shape = 'u32[]', space=smem, size = 0x4, offset = 0x4, fixed_abs, tag = 'smem constant byte address 0x4 - core index']
  #allocation1 [shape = 'u32[144,128]{1,0:T(1,128)}', space=vmem, size = 0x12000, scoped, tag = 'internal scratch']
  #allocation2 [shape = 'f32[16,16]{1,0:T(8,128)}', space=vmem, size = 0x2000, scoped, tag = 'scratch operand']
  #allocation3 [shape = 'f32[16,1]{1,0:T(8,128)}', space=vmem, size = 0x2000, scoped, tag = 'scratch operand']
  %s0 = inlined_call_operand.vmem [shape: f32[32,128], index: 0, kind: input, shape index: {}]
  %s1 = inlined_call_operand.vmem [shape: bf16[16,32,256], index: 1, kind: input, shape index: {}]
  %s2 = inlined_call_operand.vmem [shape: f32[32,256], index: 2, kind: input, shape index: {}]
  %s3 = inlined_call_operand.vmem [shape: f32[128,16], index: 3, kind: input, shape index: {}]
  %s4 = inlined_call_operand.vmem [shape: f32[1,16], index: 4, kind: input, shape index: {}]
  %s5 = inlined_call_operand.vmem [shape: f32[32,256], index: 5, kind: output, shape index: {}]
  %s6 = sld [smem:[#allocation0]]
  $region140: #{youtube_dnn_forward.1} parent=0
    _
  %s8 = ssub.s32 1, %s6
  %s9 = scalar_select 0, %s8, %s6
  $region1: #{youtube_dnn_forward.1} parent=0
    #allocation4 [shape = 'u8[131072]{0}', space=vmem, size = 0x20000, scoped, tag = 'input window, operand 1']
    #allocation5 [shape = 'u8[16384]{0}', space=vmem, size = 0x4000, scoped, tag = 'input window, operand 2']
    loop: start=0, step=1, limit=6
    $region2: #{youtube_dnn_forward.1} parent=1 // loop_pre_header
      _
    $region3: #{youtube_dnn_forward.1} parent=1 // loop_header
      %s11 = sphi 0, %s15
      %p12 = scmp.ge.s32.totalorder %s11, 6
      %s18 = sphi 0, %s30
      %s19 = sphi 0, %s26
      %s20 = sphi 0, %s18
      %s21 = sphi 0, %s19
      %s22 = sphi 0, %s20
      %s23 = sphi 0, %s21
      %s33 = sphi 0, %s35
      %s36 = sphi 0, %s33
      %s37 = sphi 0, %s36
      %s53 = sphi 0, %s37
      %s61 = sphi 0, %s63
      %s64 = sphi 0, %s61
      %s65 = sphi 0, %s64
      %s81 = sphi 0, %s65
      %s89 = sphi 0, %s91
      %s92 = sphi 0, %s89
      %s93 = sphi 0, %s92
      %s109 = sphi 0, %s93
      %s113 = sphi 0, %s113
      %s115 = sphi 0, %s113
      %s116 = sphi 0, %s115
      %s130 = sphi 0, %s116
      %s134 = sphi 0, %s134
      %s136 = sphi 0, %s134
      %s137 = sphi 0, %s136
      %s151 = sphi 0, %s137
      %s157 = sphi 0, %s159
      %s160 = sphi 0, %s157
      %s161 = sphi 0, %s160
      %s177 = sphi 0, %s161
    $region4: #{youtube_dnn_forward.1} parent=1 // loop_header_branch
      %14 = sbr.rel (%p12) target = $region8
    $region5: #{youtube_dnn_forward.1} parent=1 // loop_body
      %s16 = ssub.s32 %s11, 1
      %s17 = ssub.s32 %s11, 2
      %s24 = sadd.s32 1, %s19
      %p25 = scmp.ge.s32.totalorder %s24, 2
      %s26 = scalar_select %p25, 0, %s24
      %s27 = sadd.s32 1, %s18
      %s28 = scalar_select %p25, %s27, %s18
      %p29 = scmp.ge.s32.totalorder %s28, 2
      %s30 = scalar_select %p29, 0, %s28
      %s31 = ssub.s32 %s18, %s30
      %p32 = scmp.eq.s32.totalorder %s31, 0
      %s34 = sadd.s32 %s33, 1
      %s35 = scalar_select %p32, %s33, %s34
      %p38 = pneg %p32
      %p39 = scmp.eq.s32.totalorder %s11, 3
      %p40 = por %p38, %p39
      %p41 = scmp.ne.s32.totalorder %s33, %s36
      %p42 = scmp.eq.s32.totalorder %s11, 0
      %p43 = por %p41, %p42
      %p44 = scmp.ne.s32.totalorder %s33, %s36
      %p45 = scmp.eq.s32.totalorder %s16, 3
      %p46 = por %p44, %p45
      %p47 = scmp.ne.s32.totalorder %s36, %s37
      %p48 = scmp.eq.s32.totalorder %s16, 0
      %p49 = por %p47, %p48
      %p50 = scmp.ne.s32.totalorder %s36, %s37
      %p51 = scmp.eq.s32.totalorder %s17, 3
      %p52 = por %p50, %p51
      %p54 = scmp.ne.s32.totalorder %s37, %s53
      %p55 = scmp.eq.s32.totalorder %s17, 0
      %p56 = por %p54, %p55
      %s57 = ssub.s32 %s18, %s30
      %s58 = ssub.s32 %s19, %s26
      %s59 = sor.u32 %s57, %s58
      %p60 = scmp.eq.s32.totalorder %s59, 0
      %s62 = sadd.s32 %s61, 1
      %s63 = scalar_select %p60, %s61, %s62
      %p66 = pneg %p60
      %p67 = scmp.eq.s32.totalorder %s11, 3
      %p68 = por %p66, %p67
      %p69 = scmp.ne.s32.totalorder %s61, %s64
      %p70 = scmp.eq.s32.totalorder %s11, 0
      %p71 = por %p69, %p70
      %p72 = scmp.ne.s32.totalorder %s61, %s64
      %p73 = scmp.eq.s32.totalorder %s16, 3
      %p74 = por %p72, %p73
      %p75 = scmp.ne.s32.totalorder %s64, %s65
      %p76 = scmp.eq.s32.totalorder %s16, 0
      %p77 = por %p75, %p76
      %p78 = scmp.ne.s32.totalorder %s64, %s65
      %p79 = scmp.eq.s32.totalorder %s17, 3
      %p80 = por %p78, %p79
      %p82 = scmp.ne.s32.totalorder %s65, %s81
      %p83 = scmp.eq.s32.totalorder %s17, 0
      %p84 = por %p82, %p83
      %s85 = ssub.s32 %s18, %s30
      %s86 = ssub.s32 %s19, %s26
      %s87 = sor.u32 %s85, %s86
      %p88 = scmp.eq.s32.totalorder %s87, 0
      %s90 = sadd.s32 %s89, 1
      %s91 = scalar_select %p88, %s89, %s90
      %p94 = pneg %p88
      %p95 = scmp.eq.s32.totalorder %s11, 3
      %p96 = por %p94, %p95
      %p97 = scmp.ne.s32.totalorder %s89, %s92
      %p98 = scmp.eq.s32.totalorder %s11, 0
      %p99 = por %p97, %p98
      %p100 = scmp.ne.s32.totalorder %s89, %s92
      %p101 = scmp.eq.s32.totalorder %s16, 3
      %p102 = por %p100, %p101
      %p103 = scmp.ne.s32.totalorder %s92, %s93
      %p104 = scmp.eq.s32.totalorder %s16, 0
      %p105 = por %p103, %p104
      %p106 = scmp.ne.s32.totalorder %s92, %s93
      %p107 = scmp.eq.s32.totalorder %s17, 3
      %p108 = por %p106, %p107
      %p110 = scmp.ne.s32.totalorder %s93, %s109
      %p111 = scmp.eq.s32.totalorder %s17, 0
      %p112 = por %p110, %p111
      %s114 = sadd.s32 %s113, 1
      %p117 = scmp.eq.s32.totalorder %s11, 3
      %p118 = scmp.ne.s32.totalorder %s113, %s115
      %p119 = scmp.eq.s32.totalorder %s11, 0
      %p120 = por %p118, %p119
      %p121 = scmp.ne.s32.totalorder %s113, %s115
      %p122 = scmp.eq.s32.totalorder %s16, 3
      %p123 = por %p121, %p122
      %p124 = scmp.ne.s32.totalorder %s115, %s116
      %p125 = scmp.eq.s32.totalorder %s16, 0
      %p126 = por %p124, %p125
      %p127 = scmp.ne.s32.totalorder %s115, %s116
      %p128 = scmp.eq.s32.totalorder %s17, 3
      %p129 = por %p127, %p128
      %p131 = scmp.ne.s32.totalorder %s116, %s130
      %p132 = scmp.eq.s32.totalorder %s17, 0
      %p133 = por %p131, %p132
      %s135 = sadd.s32 %s134, 1
      %p138 = scmp.eq.s32.totalorder %s11, 3
      %p139 = scmp.ne.s32.totalorder %s134, %s136
      %p140 = scmp.eq.s32.totalorder %s11, 0
      %p141 = por %p139, %p140
      %p142 = scmp.ne.s32.totalorder %s134, %s136
      %p143 = scmp.eq.s32.totalorder %s16, 3
      %p144 = por %p142, %p143
      %p145 = scmp.ne.s32.totalorder %s136, %s137
      %p146 = scmp.eq.s32.totalorder %s16, 0
      %p147 = por %p145, %p146
      %p148 = scmp.ne.s32.totalorder %s136, %s137
      %p149 = scmp.eq.s32.totalorder %s17, 3
      %p150 = por %p148, %p149
      %p152 = scmp.ne.s32.totalorder %s137, %s151
      %p153 = scmp.eq.s32.totalorder %s17, 0
      %p154 = por %p152, %p153
      %s155 = ssub.s32 %s18, %s30
      %p156 = scmp.eq.s32.totalorder %s155, 0
      %s158 = sadd.s32 %s157, 1
      %s159 = scalar_select %p156, %s157, %s158
      %p162 = pneg %p156
      %p163 = scmp.eq.s32.totalorder %s11, 3
      %p164 = por %p162, %p163
      %p165 = scmp.ne.s32.totalorder %s157, %s160
      %p166 = scmp.eq.s32.totalorder %s11, 0
      %p167 = por %p165, %p166
      %p168 = scmp.ne.s32.totalorder %s157, %s160
      %p169 = scmp.eq.s32.totalorder %s16, 3
      %p170 = por %p168, %p169
      %p171 = scmp.ne.s32.totalorder %s160, %s161
      %p172 = scmp.eq.s32.totalorder %s16, 0
      %p173 = por %p171, %p172
      %p174 = scmp.ne.s32.totalorder %s160, %s161
      %p175 = scmp.eq.s32.totalorder %s17, 3
      %p176 = por %p174, %p175
      %p178 = scmp.ne.s32.totalorder %s161, %s177
      %p179 = scmp.eq.s32.totalorder %s17, 0
      %p180 = por %p178, %p179
      %p181 = scmp.le.s32.totalorder 1, %s11
      %p182 = scmp.lt.s32.totalorder %s11, 5
      %p183 = pnand %p181, %p182
      %p184 = pneg %p183
      // Predicated region
      $region9: #{youtube_dnn_forward.1} parent=5 // pred_check
        _
      $region10: #{youtube_dnn_forward.1} parent=5 // pred_check_branch
        %186 = sbr.rel (%p183) target = $region12
      $region11: #{youtube_dnn_forward.1} parent=5 // pred_region
        %s187 = ssub.s32 %s11, 1
        // Predicated region
        $region13: #{youtube_dnn_forward.1} parent=11 // pred_check
          %p188 = pneg %p126
        $region14: #{youtube_dnn_forward.1} parent=11 // pred_check_branch
          %190 = sbr.rel (%p188) target = $region16
        $region15: #{youtube_dnn_forward.1} parent=11 // pred_region
          _
        $region16: #{youtube_dnn_forward.1} parent=11 // pred_fallthru
          _
        // Predicated region
        $region17: #{youtube_dnn_forward.1} parent=11 // pred_check
          %p191 = pneg %p147
        $region18: #{youtube_dnn_forward.1} parent=11 // pred_check_branch
          %193 = sbr.rel (%p191) target = $region20
        $region19: #{youtube_dnn_forward.1} parent=11 // pred_region
          _
        $region20: #{youtube_dnn_forward.1} parent=11 // pred_fallthru
          _
      $region12: #{youtube_dnn_forward.1} parent=5 // pred_fallthru
        _
      %p194 = scmp.lt.s32.totalorder %s11, 4
      // Predicated region
      $region21: #{youtube_dnn_forward.1} parent=5 // pred_check
        %p195 = pneg %p194
      $region22: #{youtube_dnn_forward.1} parent=5 // pred_check_branch
        %197 = sbr.rel (%p195) target = $region24
      $region23: #{youtube_dnn_forward.1} parent=5 // pred_region
        // Predicated region
        $region25: #{youtube_dnn_forward.1} parent=23 // pred_check
          %p198 = pneg %p43
        $region26: #{youtube_dnn_forward.1} parent=23 // pred_check_branch
          %200 = sbr.rel (%p198) target = $region28
        $region27: #{youtube_dnn_forward.1} parent=23 // pred_region
          %s201 = smul.u32 2, %s18
          %p202 = scmp.lt.s32.totalorder %s201, 3
          %s203 = scalar_select %p202, %s201, 3
          %s204 = smul.addr %s203, 8
          %s205 = scalar_lea.vmem %s0, %s204
          %s206 = smul.u32 2, %s18
        $region28: #{youtube_dnn_forward.1} parent=23 // pred_fallthru
          _
        // Predicated region
        $region29: #{youtube_dnn_forward.1} parent=23 // pred_check
          %p207 = pneg %p71
        $region30: #{youtube_dnn_forward.1} parent=23 // pred_check_branch
          %209 = sbr.rel (%p207) target = $region32
        $region31: #{youtube_dnn_forward.1} parent=23 // pred_region
          %s210 = sand.u32 %s61, 1
          %s211 = sand.u32 %s61, 1
          %s212 = smul.addr %s211, 128
          %s213 = scalar_lea.vmem [#allocation4], %s212
          %s214 = smul.u32 2, %s18
          %s215 = smul.addr %s214, 2
          %s216 = sadd.s32 %s19, %s215
          %s217 = smul.addr %s216, 4
          %s218 = scalar_lea.vmem %s1, %s217
          // Predicated region
          $region33: #{youtube_dnn_forward.1} parent=31 // pred_check
            _
          $region34: #{youtube_dnn_forward.1} parent=31 // pred_check_branch
            %220 = sbr.rel (0) target = $region36
          $region35: #{youtube_dnn_forward.1} parent=31 // pred_region
            // Predicated region
            $region37: #{youtube_dnn_forward.1} parent=35 // pred_check
              _
            $region38: #{youtube_dnn_forward.1} parent=35 // pred_check_branch
              %222 = sbr.rel target = $region40
            $region39: #{youtube_dnn_forward.1} parent=35 // pred_region
              // Predicated region
              $region52: #{youtube_dnn_forward.1} parent=39 // pred_check
                _
              $region53: #{youtube_dnn_forward.1} parent=39 // pred_check_branch
                %300 = sbr.rel (0) target = $region55
              $region54: #{youtube_dnn_forward.1} parent=39 // pred_region
                loop: start=0, step=1, limit=1
                $region56: #{youtube_dnn_forward.1} parent=54 // loop_pre_header
                  _
                $region57: #{youtube_dnn_forward.1} parent=54 // loop_header
                  %s302 = sphi 0, %s306
                  %p303 = scmp.ge.s32.totalorder %s302, 1
                  %s307 = sphi %s218, %s218
                  %s308 = sphi %s213, %s213
                $region58: #{youtube_dnn_forward.1} parent=54 // loop_header_branch
                  %305 = sbr.rel (%p303) target = $region62
                $region59: #{youtube_dnn_forward.1} parent=54 // loop_body
                  _
                $region60: #{youtube_dnn_forward.1} parent=54 // loop_footer
                  %s306 = sadd.s32 1, %s302
                $region61: #{youtube_dnn_forward.1} parent=54 // loop_footer_branch
                  %301 = sbr.rel target = $region57
                $region62: #{youtube_dnn_forward.1} parent=54 // loop_exit
                  _
                %s310 = ssub.s32 16, 1
                loop: start=0, step=1, limit=1
                $region63: #{youtube_dnn_forward.1} parent=54 // loop_pre_header
                  _
                $region64: #{youtube_dnn_forward.1} parent=54 // loop_header
                  %s312 = sphi 0, %s316
                  %p313 = scmp.ge.s32.totalorder %s312, 1
                  %s317 = sphi %s218, %s218
                  %s318 = sphi %s213, %s213
                $region65: #{youtube_dnn_forward.1} parent=54 // loop_header_branch
                  %315 = sbr.rel (%p313) target = $region69
                $region66: #{youtube_dnn_forward.1} parent=54 // loop_body
                  %v319 = vld [vmem:[%s317] sm:%s310]
                  %320 = vst [vmem:[%s318] sm:%s310] %v319
                  %v321 = vld [vmem:[%s317 + $0x8] sm:%s310]
                  %322 = vst [vmem:[%s318 + $0x4] sm:%s310] %v321
                  %v323 = vld [vmem:[%s317 + $0x20] sm:%s310]
                  %324 = vst [vmem:[%s318 + $0x8] sm:%s310] %v323
                  %v325 = vld [vmem:[%s317 + $0x28] sm:%s310]
                  %326 = vst [vmem:[%s318 + $0xc] sm:%s310] %v325
                  %v327 = vld [vmem:[%s317 + $0x40] sm:%s310]
                  %328 = vst [vmem:[%s318 + $0x10] sm:%s310] %v327
                  %v329 = vld [vmem:[%s317 + $0x48] sm:%s310]
                  %330 = vst [vmem:[%s318 + $0x14] sm:%s310] %v329
                  %v331 = vld [vmem:[%s317 + $0x60] sm:%s310]
                  %332 = vst [vmem:[%s318 + $0x18] sm:%s310] %v331
                  %v333 = vld [vmem:[%s317 + $0x68] sm:%s310]
                  %334 = vst [vmem:[%s318 + $0x1c] sm:%s310] %v333
                  %v335 = vld [vmem:[%s317 + $0x80] sm:%s310]
                  %336 = vst [vmem:[%s318 + $0x20] sm:%s310] %v335
                  %v337 = vld [vmem:[%s317 + $0x88] sm:%s310]
                  %338 = vst [vmem:[%s318 + $0x24] sm:%s310] %v337
                  %v339 = vld [vmem:[%s317 + $0xa0] sm:%s310]
                  %340 = vst [vmem:[%s318 + $0x28] sm:%s310] %v339
                  %v341 = vld [vmem:[%s317 + $0xa8] sm:%s310]
                  %342 = vst [vmem:[%s318 + $0x2c] sm:%s310] %v341
                  %v343 = vld [vmem:[%s317 + $0xc0] sm:%s310]
                  %344 = vst [vmem:[%s318 + $0x30] sm:%s310] %v343
                  %v345 = vld [vmem:[%s317 + $0xc8] sm:%s310]
                  %346 = vst [vmem:[%s318 + $0x34] sm:%s310] %v345
                  %v347 = vld [vmem:[%s317 + $0xe0] sm:%s310]
                  %348 = vst [vmem:[%s318 + $0x38] sm:%s310] %v347
                  %v349 = vld [vmem:[%s317 + $0xe8] sm:%s310]
                  %350 = vst [vmem:[%s318 + $0x3c] sm:%s310] %v349
                  %v351 = vld [vmem:[%s317 + $0x100] sm:%s310]
                  %352 = vst [vmem:[%s318 + $0x40] sm:%s310] %v351
                  %v353 = vld [vmem:[%s317 + $0x108] sm:%s310]
                  %354 = vst [vmem:[%s318 + $0x44] sm:%s310] %v353
                  %v355 = vld [vmem:[%s317 + $0x120] sm:%s310]
                  %356 = vst [vmem:[%s318 + $0x48] sm:%s310] %v355
                  %v357 = vld [vmem:[%s317 + $0x128] sm:%s310]
                  %358 = vst [vmem:[%s318 + $0x4c] sm:%s310] %v357
                  %v359 = vld [vmem:[%s317 + $0x140] sm:%s310]
                  %360 = vst [vmem:[%s318 + $0x50] sm:%s310] %v359
                  %v361 = vld [vmem:[%s317 + $0x148] sm:%s310]
                  %362 = vst [vmem:[%s318 + $0x54] sm:%s310] %v361
                  %v363 = vld [vmem:[%s317 + $0x160] sm:%s310]
                  %364 = vst [vmem:[%s318 + $0x58] sm:%s310] %v363
                  %v365 = vld [vmem:[%s317 + $0x168] sm:%s310]
                  %366 = vst [vmem:[%s318 + $0x5c] sm:%s310] %v365
                  %v367 = vld [vmem:[%s317 + $0x180] sm:%s310]
                  %368 = vst [vmem:[%s318 + $0x60] sm:%s310] %v367
                  %v369 = vld [vmem:[%s317 + $0x188] sm:%s310]
                  %370 = vst [vmem:[%s318 + $0x64] sm:%s310] %v369
                  %v371 = vld [vmem:[%s317 + $0x1a0] sm:%s310]
                  %372 = vst [vmem:[%s318 + $0x68] sm:%s310] %v371
                  %v373 = vld [vmem:[%s317 + $0x1a8] sm:%s310]
                  %374 = vst [vmem:[%s318 + $0x6c] sm:%s310] %v373
                  %v375 = vld [vmem:[%s317 + $0x1c0] sm:%s310]
                  %376 = vst [vmem:[%s318 + $0x70] sm:%s310] %v375
                  %v377 = vld [vmem:[%s317 + $0x1c8] sm:%s310]
                  %378 = vst [vmem:[%s318 + $0x74] sm:%s310] %v377
                  %v379 = vld [vmem:[%s317 + $0x1e0] sm:%s310]
                  %380 = vst [vmem:[%s318 + $0x78] sm:%s310] %v379
                  %v381 = vld [vmem:[%s317 + $0x1e8] sm:%s310]
                  %382 = vst [vmem:[%s318 + $0x7c] sm:%s310] %v381
                $region67: #{youtube_dnn_forward.1} parent=54 // loop_footer
                  %s316 = sadd.s32 1, %s312
                $region68: #{youtube_dnn_forward.1} parent=54 // loop_footer_branch
                  %311 = sbr.rel target = $region64
                $region69: #{youtube_dnn_forward.1} parent=54 // loop_exit
                  _
              $region55: #{youtube_dnn_forward.1} parent=39 // pred_fallthru
                _
            $region40: #{youtube_dnn_forward.1} parent=35 // pred_fallthru
              _
            // Predicated region
            $region41: #{youtube_dnn_forward.1} parent=35 // pred_check
              _
            $region42: #{youtube_dnn_forward.1} parent=35 // pred_check_branch
              %224 = sbr.rel (0) target = $region44
            $region43: #{youtube_dnn_forward.1} parent=35 // pred_region
              %s226 = ssub.s32 16, 1
              loop: start=0, step=1, limit=1
              $region45: #{youtube_dnn_forward.1} parent=43 // loop_pre_header
                _
              $region46: #{youtube_dnn_forward.1} parent=43 // loop_header
                %s228 = sphi 0, %s232
                %p229 = scmp.ge.s32.totalorder %s228, 1
                %s233 = sphi %s218, %s218
                %s234 = sphi %s213, %s213
              $region47: #{youtube_dnn_forward.1} parent=43 // loop_header_branch
                %231 = sbr.rel (%p229) target = $region51
              $region48: #{youtube_dnn_forward.1} parent=43 // loop_body
                %v235 = vld [vmem:[%s233] sm:%s226]
                %236 = vst [vmem:[%s234] sm:%s226] %v235
                %v237 = vld [vmem:[%s233 + $0x8] sm:%s226]
                %238 = vst [vmem:[%s234 + $0x4] sm:%s226] %v237
                %v239 = vld [vmem:[%s233 + $0x20] sm:%s226]
                %240 = vst [vmem:[%s234 + $0x8] sm:%s226] %v239
                %v241 = vld [vmem:[%s233 + $0x28] sm:%s226]
                %242 = vst [vmem:[%s234 + $0xc] sm:%s226] %v241
                %v243 = vld [vmem:[%s233 + $0x40] sm:%s226]
                %244 = vst [vmem:[%s234 + $0x10] sm:%s226] %v243
                %v245 = vld [vmem:[%s233 + $0x48] sm:%s226]
                %246 = vst [vmem:[%s234 + $0x14] sm:%s226] %v245
                %v247 = vld [vmem:[%s233 + $0x60] sm:%s226]
                %248 = vst [vmem:[%s234 + $0x18] sm:%s226] %v247
                %v249 = vld [vmem:[%s233 + $0x68] sm:%s226]
                %250 = vst [vmem:[%s234 + $0x1c] sm:%s226] %v249
                %v251 = vld [vmem:[%s233 + $0x80] sm:%s226]
                %252 = vst [vmem:[%s234 + $0x20] sm:%s226] %v251
                %v253 = vld [vmem:[%s233 + $0x88] sm:%s226]
                %254 = vst [vmem:[%s234 + $0x24] sm:%s226] %v253
                %v255 = vld [vmem:[%s233 + $0xa0] sm:%s226]
                %256 = vst [vmem:[%s234 + $0x28] sm:%s226] %v255
                %v257 = vld [vmem:[%s233 + $0xa8] sm:%s226]
                %258 = vst [vmem:[%s234 + $0x2c] sm:%s226] %v257
                %v259 = vld [vmem:[%s233 + $0xc0] sm:%s226]
                %260 = vst [vmem:[%s234 + $0x30] sm:%s226] %v259
                %v261 = vld [vmem:[%s233 + $0xc8] sm:%s226]
                %262 = vst [vmem:[%s234 + $0x34] sm:%s226] %v261
                %v263 = vld [vmem:[%s233 + $0xe0] sm:%s226]
                %264 = vst [vmem:[%s234 + $0x38] sm:%s226] %v263
                %v265 = vld [vmem:[%s233 + $0xe8] sm:%s226]
                %266 = vst [vmem:[%s234 + $0x3c] sm:%s226] %v265
                %v267 = vld [vmem:[%s233 + $0x100] sm:%s226]
                %268 = vst [vmem:[%s234 + $0x40] sm:%s226] %v267
                %v269 = vld [vmem:[%s233 + $0x108] sm:%s226]
                %270 = vst [vmem:[%s234 + $0x44] sm:%s226] %v269
                %v271 = vld [vmem:[%s233 + $0x120] sm:%s226]
                %272 = vst [vmem:[%s234 + $0x48] sm:%s226] %v271
                %v273 = vld [vmem:[%s233 + $0x128] sm:%s226]
                %274 = vst [vmem:[%s234 + $0x4c] sm:%s226] %v273
                %v275 = vld [vmem:[%s233 + $0x140] sm:%s226]
                %276 = vst [vmem:[%s234 + $0x50] sm:%s226] %v275
                %v277 = vld [vmem:[%s233 + $0x148] sm:%s226]
                %278 = vst [vmem:[%s234 + $0x54] sm:%s226] %v277
                %v279 = vld [vmem:[%s233 + $0x160] sm:%s226]
                %280 = vst [vmem:[%s234 + $0x58] sm:%s226] %v279
                %v281 = vld [vmem:[%s233 + $0x168] sm:%s226]
                %282 = vst [vmem:[%s234 + $0x5c] sm:%s226] %v281
                %v283 = vld [vmem:[%s233 + $0x180] sm:%s226]
                %284 = vst [vmem:[%s234 + $0x60] sm:%s226] %v283
                %v285 = vld [vmem:[%s233 + $0x188] sm:%s226]
                %286 = vst [vmem:[%s234 + $0x64] sm:%s226] %v285
                %v287 = vld [vmem:[%s233 + $0x1a0] sm:%s226]
                %288 = vst [vmem:[%s234 + $0x68] sm:%s226] %v287
                %v289 = vld [vmem:[%s233 + $0x1a8] sm:%s226]
                %290 = vst [vmem:[%s234 + $0x6c] sm:%s226] %v289
                %v291 = vld [vmem:[%s233 + $0x1c0] sm:%s226]
                %292 = vst [vmem:[%s234 + $0x70] sm:%s226] %v291
                %v293 = vld [vmem:[%s233 + $0x1c8] sm:%s226]
                %294 = vst [vmem:[%s234 + $0x74] sm:%s226] %v293
                %v295 = vld [vmem:[%s233 + $0x1e0] sm:%s226]
                %296 = vst [vmem:[%s234 + $0x78] sm:%s226] %v295
                %v297 = vld [vmem:[%s233 + $0x1e8] sm:%s226]
                %298 = vst [vmem:[%s234 + $0x7c] sm:%s226] %v297
              $region49: #{youtube_dnn_forward.1} parent=43 // loop_footer
                %s232 = sadd.s32 1, %s228
              $region50: #{youtube_dnn_forward.1} parent=43 // loop_footer_branch
                %227 = sbr.rel target = $region46
              $region51: #{youtube_dnn_forward.1} parent=43 // loop_exit
                _
            $region44: #{youtube_dnn_forward.1} parent=35 // pred_fallthru
              _
          $region36: #{youtube_dnn_forward.1} parent=31 // pred_fallthru
            _
          %383 = vnop
        $region32: #{youtube_dnn_forward.1} parent=23 // pred_fallthru
          _
        // Predicated region
        $region70: #{youtube_dnn_forward.1} parent=23 // pred_check
          %p384 = pneg %p99
        $region71: #{youtube_dnn_forward.1} parent=23 // pred_check_branch
          %386 = sbr.rel (%p384) target = $region73
        $region72: #{youtube_dnn_forward.1} parent=23 // pred_region
          %s387 = sand.u32 %s89, 1
          %s388 = sand.u32 %s89, 1
          %s389 = smul.addr %s388, 16
          %s390 = scalar_lea.vmem [#allocation5], %s389
          %s391 = smul.u32 2, %s18
          %s392 = smul.addr %s391, 2
          %s393 = sadd.s32 %s19, %s392
          %s394 = smul.addr %s393, 8
          %s395 = scalar_lea.vmem %s2, %s394
          // Predicated region
          $region74: #{youtube_dnn_forward.1} parent=72 // pred_check
            _
          $region75: #{youtube_dnn_forward.1} parent=72 // pred_check_branch
            %397 = sbr.rel (0) target = $region77
          $region76: #{youtube_dnn_forward.1} parent=72 // pred_region
            // Predicated region
            $region78: #{youtube_dnn_forward.1} parent=76 // pred_check
              _
            $region79: #{youtube_dnn_forward.1} parent=76 // pred_check_branch
              %399 = sbr.rel (0) target = $region81
            $region80: #{youtube_dnn_forward.1} parent=76 // pred_region
              // Predicated region
              $region93: #{youtube_dnn_forward.1} parent=80 // pred_check
                _
              $region94: #{youtube_dnn_forward.1} parent=80 // pred_check_branch
                %417 = sbr.rel (0) target = $region96
              $region95: #{youtube_dnn_forward.1} parent=80 // pred_region
                loop: start=0, step=1, limit=1
                $region97: #{youtube_dnn_forward.1} parent=95 // loop_pre_header
                  _
                $region98: #{youtube_dnn_forward.1} parent=95 // loop_header
                  %s419 = sphi 0, %s423
                  %p420 = scmp.ge.s32.totalorder %s419, 1
                  %s424 = sphi %s395, %s395
                  %s425 = sphi %s390, %s390
                $region99: #{youtube_dnn_forward.1} parent=95 // loop_header_branch
                  %422 = sbr.rel (%p420) target = $region103
                $region100: #{youtube_dnn_forward.1} parent=95 // loop_body
                  %v426 = vld [vmem:[%s424] sm:$0xff]
                  %427 = vst [vmem:[%s425] sm:$0xff] %v426
                  %v428 = vld [vmem:[%s424 + $0x10] sm:$0xff]
                  %429 = vst [vmem:[%s425 + $0x8] sm:$0xff] %v428
                $region101: #{youtube_dnn_forward.1} parent=95 // loop_footer
                  %s423 = sadd.s32 1, %s419
                $region102: #{youtube_dnn_forward.1} parent=95 // loop_footer_branch
                  %418 = sbr.rel target = $region98
                $region103: #{youtube_dnn_forward.1} parent=95 // loop_exit
                  _
              $region96: #{youtube_dnn_forward.1} parent=80 // pred_fallthru
                _
              // Predicated region
              $region104: #{youtube_dnn_forward.1} parent=80 // pred_check
                _
              $region105: #{youtube_dnn_forward.1} parent=80 // pred_check_branch
                %431 = sbr.rel target = $region107
              $region106: #{youtube_dnn_forward.1} parent=80 // pred_region
                _
              $region107: #{youtube_dnn_forward.1} parent=80 // pred_fallthru
                _
            $region81: #{youtube_dnn_forward.1} parent=76 // pred_fallthru
              _
            // Predicated region
            $region82: #{youtube_dnn_forward.1} parent=76 // pred_check
              _
            $region83: #{youtube_dnn_forward.1} parent=76 // pred_check_branch
              %401 = sbr.rel target = $region85
            $region84: #{youtube_dnn_forward.1} parent=76 // pred_region
              %s403 = ssub.s32 256, 1
              loop: start=0, step=1, limit=1
              $region86: #{youtube_dnn_forward.1} parent=84 // loop_pre_header
                _
              $region87: #{youtube_dnn_forward.1} parent=84 // loop_header
                %s405 = sphi 0, %s409
                %p406 = scmp.ge.s32.totalorder %s405, 1
                %s410 = sphi %s395, %s395
                %s411 = sphi %s390, %s390
              $region88: #{youtube_dnn_forward.1} parent=84 // loop_header_branch
                %408 = sbr.rel (%p406) target = $region92
              $region89: #{youtube_dnn_forward.1} parent=84 // loop_body
                %v412 = vld [vmem:[%s410] sm:%s403]
                %413 = vst [vmem:[%s411] sm:%s403] %v412
                %v414 = vld [vmem:[%s410 + $0x10] sm:%s403]
                %415 = vst [vmem:[%s411 + $0x8] sm:%s403] %v414
              $region90: #{youtube_dnn_forward.1} parent=84 // loop_footer
                %s409 = sadd.s32 1, %s405
              $region91: #{youtube_dnn_forward.1} parent=84 // loop_footer_branch
                %404 = sbr.rel target = $region87
              $region92: #{youtube_dnn_forward.1} parent=84 // loop_exit
                _
            $region85: #{youtube_dnn_forward.1} parent=76 // pred_fallthru
              _
          $region77: #{youtube_dnn_forward.1} parent=72 // pred_fallthru
            _
          %432 = vnop
        $region73: #{youtube_dnn_forward.1} parent=23 // pred_fallthru
          _
      $region24: #{youtube_dnn_forward.1} parent=5 // pred_fallthru
        _
      %p433 = scmp.le.s32.totalorder 1, %s11
      %p434 = scmp.lt.s32.totalorder %s11, 5
      %p435 = pnand %p433, %p434
      %p436 = pneg %p435
      // Predicated region
      $region108: #{youtube_dnn_forward.1} parent=5 // pred_check
        _
      $region109: #{youtube_dnn_forward.1} parent=5 // pred_check_branch
        %438 = sbr.rel (%p435) target = $region111
      $region110: #{youtube_dnn_forward.1} parent=5 // pred_region
        %s439 = ssub.s32 %s11, 1
        %s440 = sand.u32 %s64, 1
        %s441 = sand.u32 %s64, 1
        %s442 = smul.addr %s441, 128
        %s443 = scalar_lea.vmem [#allocation4], %s442
        // Predicated region
        $region112: #{youtube_dnn_forward.1} parent=110 // pred_check
          %p444 = pneg %p77
        $region113: #{youtube_dnn_forward.1} parent=110 // pred_check_branch
          %446 = sbr.rel (%p444) target = $region115
        $region114: #{youtube_dnn_forward.1} parent=110 // pred_region
          _
        $region115: #{youtube_dnn_forward.1} parent=110 // pred_fallthru
          _
        %s447 = sand.u32 %s92, 1
        %s448 = sand.u32 %s92, 1
        %s449 = smul.addr %s448, 16
        %s450 = scalar_lea.vmem [#allocation5], %s449
        // Predicated region
        $region116: #{youtube_dnn_forward.1} parent=110 // pred_check
          %p451 = pneg %p105
        $region117: #{youtube_dnn_forward.1} parent=110 // pred_check_branch
          %453 = sbr.rel (%p451) target = $region119
        $region118: #{youtube_dnn_forward.1} parent=110 // pred_region
          _
        $region119: #{youtube_dnn_forward.1} parent=110 // pred_fallthru
          _
        %s454 = smul.u32 2, %s20
        %p455 = scmp.lt.s32.totalorder %s454, 3
        %s456 = scalar_select %p455, %s454, 3
        %s457 = smul.addr %s456, 8
        %s458 = scalar_lea.vmem %s0, %s457
        %p459 = pneg %p49
        %p460 = pneg %p46
        %s461 = sand.u32 %s64, 1
        %s462 = sand.u32 %s64, 1
        %s463 = smul.addr %s462, 128
        %s464 = scalar_lea.vmem [#allocation4], %s463
        %p465 = pneg %p77
        %p466 = pneg %p74
        %s467 = sand.u32 %s92, 1
        %s468 = sand.u32 %s92, 1
        %s469 = smul.addr %s468, 16
        %s470 = scalar_lea.vmem [#allocation5], %s469
        %p471 = pneg %p105
        %p472 = pneg %p102
        %p473 = pneg %p126
        %p474 = pneg %p123
        %p475 = pneg %p147
        %p476 = pneg %p144
        %p477 = pneg %p173
        %p478 = pneg %p170
        %s479 = smul.u32 2, %s20
        %p480 = scmp.lt.s32.totalorder %s479, 3
        %s481 = scalar_select %p480, %s479, 3
        %s482 = smul.addr %s481, 2
        %s483 = smul.addr %s482, 8
        %s484 = scalar_lea.vmem %s5, %s483
        %s485 = smul.u32 2, %s20
        %p486 = scmp.lt.s32.totalorder %s485, 3
        %s487 = scalar_select %p486, %s485, 3
        %s488 = smul.addr %s487, 8
        %s489 = scalar_lea.vmem %s0, %s488
        %s490 = smul.u32 2, %s20
        %s491 = smul.u32 2, %s20
        %s492 = smul.u32 2, %s20
        %s493 = smul.u32 2, %s20
        %p494 = scmp.lt.s32.totalorder %s493, 3
        %s495 = scalar_select %p494, %s493, 3
        %s496 = smul.addr %s495, 2
        %s497 = smul.addr %s496, 8
        %s498 = scalar_lea.vmem %s5, %s497
        %s499 = smul.u32 2, %s20
        %p500 = scmp.eq.s32.totalorder %s21, 0
        // Predicated region
        $region120: #{youtube_dnn_forward.1} parent=110 // pred_check
          %p501 = pneg %p500
        $region121: #{youtube_dnn_forward.1} parent=110 // pred_check_branch
          %503 = sbr.rel (%p501) target = $region123
        $region122: #{youtube_dnn_forward.1} parent=110 // pred_region
          %v504 = vld [vmem:[%s489] sm:$0xff]
          %v505 = vld [vmem:[%s489 + $0x8] sm:$0xff]
          %v506 = vld [vmem:[%s3] sm:$0xff]
          %v507 = vld [vmem:[%s3 + $0x8] sm:$0xff]
          %v508 = vld [vmem:[%s3 + $0x10] sm:$0xff]
          %v509 = vld [vmem:[%s3 + $0x18] sm:$0xff]
          %v510 = vld [vmem:[%s3 + $0x20] sm:$0xff]
          %v511 = vld [vmem:[%s3 + $0x28] sm:$0xff]
          %v512 = vld [vmem:[%s3 + $0x30] sm:$0xff]
          %v513 = vld [vmem:[%s3 + $0x38] sm:$0xff]
          %v514 = vld [vmem:[%s3 + $0x40] sm:$0xff]
          %v515 = vld [vmem:[%s3 + $0x48] sm:$0xff]
          %v516 = vld [vmem:[%s3 + $0x50] sm:$0xff]
          %v517 = vld [vmem:[%s3 + $0x58] sm:$0xff]
          %v518 = vld [vmem:[%s3 + $0x60] sm:$0xff]
          %v519 = vld [vmem:[%s3 + $0x68] sm:$0xff]
          %v520 = vld [vmem:[%s3 + $0x70] sm:$0xff]
          %v521 = vld [vmem:[%s3 + $0x78] sm:$0xff]
          %v522 = vld [vmem:[%s4] sm:$0x1]
          %v524 = vlaneseq
          %v525 = vshrl.u32 %v524, 7
          %v526 = vsub.s32 0, %v525
          %v527 = vrot.slane %v522, %v526
          %529 = vmatprep.subr.mxu0 0.0
          %530 = vmatpush1.msra.mxu0 %v521
          %531 = vmatprep.subr.mxu0 0.0
          %532 = vmatpush1.msra.mxu0 %v520
          %533 = vmatprep.subr.mxu0 0.0
          %534 = vmatpush1.msra.mxu0 %v519
          %535 = vmatprep.subr.mxu0 0.0
          %536 = vmatpush1.msra.mxu0 %v518
          %537 = vmatprep.subr.mxu0 0.0
          %538 = vmatpush1.msra.mxu0 %v517
          %539 = vmatprep.subr.mxu0 0.0
          %540 = vmatpush1.msra.mxu0 %v516
          %541 = vmatprep.subr.mxu0 0.0
          %542 = vmatpush1.msra.mxu0 %v515
          %543 = vmatprep.subr.mxu0 0.0
          %544 = vmatpush1.msra.mxu0 %v514
          %545 = vmatprep.subr.mxu0 0.0
          %546 = vmatpush1.msra.mxu0 %v513
          %547 = vmatprep.subr.mxu0 0.0
          %548 = vmatpush1.msra.mxu0 %v512
          %549 = vmatprep.subr.mxu0 0.0
          %550 = vmatpush1.msra.mxu0 %v511
          %551 = vmatprep.subr.mxu0 0.0
          %552 = vmatpush1.msra.mxu0 %v510
          %553 = vmatprep.subr.mxu0 0.0
          %554 = vmatpush1.msra.mxu0 %v509
          %555 = vmatprep.subr.mxu0 0.0
          %556 = vmatpush1.msra.mxu0 %v508
          %557 = vmatprep.subr.mxu0 0.0
          %558 = vmatpush1.msra.mxu0 %v507
          %559 = vmatprep.subr.mxu0 0.0
          %560 = vmatpush1.msra.mxu0 %v506
          %561 = vmatprep.subr.mxu0 0.0
          %562 = vmatpush2.msra.mxu0 0.0
          %563 = vmatprep.subr.mxu0 0.0
          %564 = vmatpush2.msra.mxu0 0.0
          %565 = vmatprep.subr.mxu0 0.0
          %566 = vmatpush2.msra.mxu0 0.0
          %567 = vmatprep.subr.mxu0 0.0
          %568 = vmatpush2.msra.mxu0 0.0
          %569 = vmatprep.subr.mxu0 0.0
          %570 = vmatpush2.msra.mxu0 0.0
          %571 = vmatprep.subr.mxu0 0.0
          %572 = vmatpush2.msra.mxu0 0.0
          %573 = vmatprep.subr.mxu0 0.0
          %574 = vmatpush2.msra.mxu0 0.0
          %575 = vmatprep.subr.mxu0 0.0
          %576 = vmatpush2.msra.mxu0 0.0
          %577 = vmatprep.subr.mxu0 0.0
          %578 = vmatpush2.msra.mxu0 0.0
          %579 = vmatprep.subr.mxu0 0.0
          %580 = vmatpush2.msra.mxu0 0.0
          %581 = vmatprep.subr.mxu0 0.0
          %582 = vmatpush2.msra.mxu0 0.0
          %583 = vmatprep.subr.mxu0 0.0
          %584 = vmatpush2.msra.mxu0 0.0
          %585 = vmatprep.subr.mxu0 0.0
          %586 = vmatpush2.msra.mxu0 0.0
          %587 = vmatprep.subr.mxu0 0.0
          %588 = vmatpush2.msra.mxu0 0.0
          %589 = vmatprep.subr.mxu0 0.0
          %590 = vmatpush2.msra.mxu0 0.0
          %591 = vmatprep.subr.mxu0 0.0
          %592 = vmatpush2.msra.mxu0 0.0
          %593 = vmatprep.mubr.f32.mxu0 0.0
          %594 = vmatmul.mubr.f32.gmra.mxu0 %v504
          %v595 = vpop.f32.mrf.mxu0
          %v596 = vadd.f32 %v527, %v595
          %v597 = vpop.f32.mrf.mxu0
          %598 = vmatprep.mubr.f32.mxu0 0.0
          %599 = vmatmul.mubr.f32.gmra.mxu0 %v505
          %v600 = vpop.f32.mrf.mxu0
          %v601 = vadd.f32 %v527, %v600
          %v602 = vpop.f32.mrf.mxu0
          %603 = vdwg.mxu0
          %v604 = vmul.f32 %v596, %v596
          %v605 = vmul.f32 %v601, %v601
          %vm606 = vcmask 130048
          %v607 = vsel %vm606, %v604, 0.0
          %608 = vadd.xlane.f32.xlu0 %v607
          %v609 = vpop.xlane.xlu0 %608
          %v610 = vsel %vm606, %v605, 0.0
          %611 = vadd.xlane.f32.xlu0 %v610
          %v612 = vpop.xlane.xlu0 %611
          %v613 = vmax.f32 %v609, 1e-08
          %v614 = vmax.f32 %v612, 1e-08
          %v615 = vrsqrt.pop %v613
          %v616 = vrsqrt.pop %v614
          %v617 = vmul.f32 %v596, %v615
          %v618 = vmul.f32 %v601, %v616
          %619 = vst.msk [vmem:[#allocation2] sm:$0xff] %vm606, %v617
          %620 = vst.msk [vmem:[#allocation2 + $0x8] sm:$0xff] %vm606, %v618
          %vm621 = vcmask 7168
          %622 = vst.msk [vmem:[#allocation3] sm:$0xff] %vm621, 0.0
          %623 = vst.msk [vmem:[#allocation3 + $0x8] sm:$0xff] %vm621, 0.0
        $region123: #{youtube_dnn_forward.1} parent=110 // pred_fallthru
          _
        %v624 = vld [vmem:[#allocation2] sm:$0xff]
        %v625 = vld [vmem:[#allocation2 + $0x8] sm:$0xff]
        %v626 = vld [vmem:[%s443] sm:$0xf]
        %v627 = vld [vmem:[%s443 + $0x4] sm:$0xf]
        %v628 = vunpack.c.l.bf16 %v626
        %v629 = vunpack.c.l.bf16 %v627
        %631 = vset.pattern.permute.xlu0 0
        %632 = vperm.xlu0 %631, %v624
        %v633 = vpop.permute.xlu0 %632
        %636 = vset.pattern.permute.xlu0 0
        %637 = vperm.xlu0 %636, %v625
        %v638 = vpop.permute.xlu0 %637
        %v640 = vmul.f32 %v633, %v628
        %v641 = vmul.f32 %v638, %v629
        %s642 = scalar_lea.vmem %s443, 8 [#allocation4]
        %v643 = vld [vmem:[%s642] sm:$0xf]
        %v644 = vld [vmem:[%s642 + $0x4] sm:$0xf]
        %v645 = vunpack.c.l.bf16 %v643
        %v646 = vunpack.c.l.bf16 %v644
        %647 = vset.pattern.permute.xlu0 1
        %648 = vperm.xlu0 %647, %v624
        %v649 = vpop.permute.xlu0 %648
        %651 = vset.pattern.permute.xlu0 1
        %652 = vperm.xlu0 %651, %v625
        %v653 = vpop.permute.xlu0 %652
        %v655 = vmul.f32 %v649, %v645
        %v656 = vmul.f32 %v653, %v646
        %v657 = vadd.f32 %v640, %v655
        %v658 = vadd.f32 %v641, %v656
        %s659 = scalar_lea.vmem %s443, 16 [#allocation4]
        %v660 = vld [vmem:[%s659] sm:$0xf]
        %v661 = vld [vmem:[%s659 + $0x4] sm:$0xf]
        %v662 = vunpack.c.l.bf16 %v660
        %v663 = vunpack.c.l.bf16 %v661
        %664 = vset.pattern.permute.xlu0 2
        %665 = vperm.xlu0 %664, %v624
        %v666 = vpop.permute.xlu0 %665
        %668 = vset.pattern.permute.xlu0 2
        %669 = vperm.xlu0 %668, %v625
        %v670 = vpop.permute.xlu0 %669
        %v672 = vmul.f32 %v666, %v662
        %v673 = vmul.f32 %v670, %v663
        %v674 = vadd.f32 %v657, %v672
        %v675 = vadd.f32 %v658, %v673
        %s676 = scalar_lea.vmem %s443, 24 [#allocation4]
        %v677 = vld [vmem:[%s676] sm:$0xf]
        %v678 = vld [vmem:[%s676 + $0x4] sm:$0xf]
        %v679 = vunpack.c.l.bf16 %v677
        %v680 = vunpack.c.l.bf16 %v678
        %681 = vset.pattern.permute.xlu0 3
        %682 = vperm.xlu0 %681, %v624
        %v683 = vpop.permute.xlu0 %682
        %685 = vset.pattern.permute.xlu0 3
        %686 = vperm.xlu0 %685, %v625
        %v687 = vpop.permute.xlu0 %686
        %v689 = vmul.f32 %v683, %v679
        %v690 = vmul.f32 %v687, %v680
        %v691 = vadd.f32 %v674, %v689
        %v692 = vadd.f32 %v675, %v690
        %s693 = scalar_lea.vmem %s443, 32 [#allocation4]
        %v694 = vld [vmem:[%s693] sm:$0xf]
        %v695 = vld [vmem:[%s693 + $0x4] sm:$0xf]
        %v696 = vunpack.c.l.bf16 %v694
        %v697 = vunpack.c.l.bf16 %v695
        %698 = vset.pattern.permute.xlu0 4
        %699 = vperm.xlu0 %698, %v624
        %v700 = vpop.permute.xlu0 %699
        %702 = vset.pattern.permute.xlu0 4
        %703 = vperm.xlu0 %702, %v625
        %v704 = vpop.permute.xlu0 %703
        %v706 = vmul.f32 %v700, %v696
        %v707 = vmul.f32 %v704, %v697
        %v708 = vadd.f32 %v691, %v706
        %v709 = vadd.f32 %v692, %v707
        %s710 = scalar_lea.vmem %s443, 40 [#allocation4]
        %v711 = vld [vmem:[%s710] sm:$0xf]
        %v712 = vld [vmem:[%s710 + $0x4] sm:$0xf]
        %v713 = vunpack.c.l.bf16 %v711
        %v714 = vunpack.c.l.bf16 %v712
        %715 = vset.pattern.permute.xlu0 5
        %716 = vperm.xlu0 %715, %v624
        %v717 = vpop.permute.xlu0 %716
        %719 = vset.pattern.permute.xlu0 5
        %720 = vperm.xlu0 %719, %v625
        %v721 = vpop.permute.xlu0 %720
        %v723 = vmul.f32 %v717, %v713
        %v724 = vmul.f32 %v721, %v714
        %v725 = vadd.f32 %v708, %v723
        %v726 = vadd.f32 %v709, %v724
        %s727 = scalar_lea.vmem %s443, 48 [#allocation4]
        %v728 = vld [vmem:[%s727] sm:$0xf]
        %v729 = vld [vmem:[%s727 + $0x4] sm:$0xf]
        %v730 = vunpack.c.l.bf16 %v728
        %v731 = vunpack.c.l.bf16 %v729
        %732 = vset.pattern.permute.xlu0 6
        %733 = vperm.xlu0 %732, %v624
        %v734 = vpop.permute.xlu0 %733
        %736 = vset.pattern.permute.xlu0 6
        %737 = vperm.xlu0 %736, %v625
        %v738 = vpop.permute.xlu0 %737
        %v740 = vmul.f32 %v734, %v730
        %v741 = vmul.f32 %v738, %v731
        %v742 = vadd.f32 %v725, %v740
        %v743 = vadd.f32 %v726, %v741
        %s744 = scalar_lea.vmem %s443, 56 [#allocation4]
        %v745 = vld [vmem:[%s744] sm:$0xf]
        %v746 = vld [vmem:[%s744 + $0x4] sm:$0xf]
        %v747 = vunpack.c.l.bf16 %v745
        %v748 = vunpack.c.l.bf16 %v746
        %749 = vset.pattern.permute.xlu0 7
        %750 = vperm.xlu0 %749, %v624
        %v751 = vpop.permute.xlu0 %750
        %753 = vset.pattern.permute.xlu0 7
        %754 = vperm.xlu0 %753, %v625
        %v755 = vpop.permute.xlu0 %754
        %v757 = vmul.f32 %v751, %v747
        %v758 = vmul.f32 %v755, %v748
        %v759 = vadd.f32 %v742, %v757
        %v760 = vadd.f32 %v743, %v758
        %s761 = scalar_lea.vmem %s443, 64 [#allocation4]
        %v762 = vld [vmem:[%s761] sm:$0xf]
        %v763 = vld [vmem:[%s761 + $0x4] sm:$0xf]
        %v764 = vunpack.c.l.bf16 %v762
        %v765 = vunpack.c.l.bf16 %v763
        %766 = vset.pattern.permute.xlu0 8
        %767 = vperm.xlu0 %766, %v624
        %v768 = vpop.permute.xlu0 %767
        %770 = vset.pattern.permute.xlu0 8
        %771 = vperm.xlu0 %770, %v625
        %v772 = vpop.permute.xlu0 %771
        %v774 = vmul.f32 %v768, %v764
        %v775 = vmul.f32 %v772, %v765
        %v776 = vadd.f32 %v759, %v774
        %v777 = vadd.f32 %v760, %v775
        %s778 = scalar_lea.vmem %s443, 72 [#allocation4]
        %v779 = vld [vmem:[%s778] sm:$0xf]
        %v780 = vld [vmem:[%s778 + $0x4] sm:$0xf]
        %v781 = vunpack.c.l.bf16 %v779
        %v782 = vunpack.c.l.bf16 %v780
        %783 = vset.pattern.permute.xlu0 9
        %784 = vperm.xlu0 %783, %v624
        %v785 = vpop.permute.xlu0 %784
        %787 = vset.pattern.permute.xlu0 9
        %788 = vperm.xlu0 %787, %v625
        %v789 = vpop.permute.xlu0 %788
        %v791 = vmul.f32 %v785, %v781
        %v792 = vmul.f32 %v789, %v782
        %v793 = vadd.f32 %v776, %v791
        %v794 = vadd.f32 %v777, %v792
        %s795 = scalar_lea.vmem %s443, 80 [#allocation4]
        %v796 = vld [vmem:[%s795] sm:$0xf]
        %v797 = vld [vmem:[%s795 + $0x4] sm:$0xf]
        %v798 = vunpack.c.l.bf16 %v796
        %v799 = vunpack.c.l.bf16 %v797
        %800 = vset.pattern.permute.xlu0 10
        %801 = vperm.xlu0 %800, %v624
        %v802 = vpop.permute.xlu0 %801
        %804 = vset.pattern.permute.xlu0 10
        %805 = vperm.xlu0 %804, %v625
        %v806 = vpop.permute.xlu0 %805
        %v808 = vmul.f32 %v802, %v798
        %v809 = vmul.f32 %v806, %v799
        %v810 = vadd.f32 %v793, %v808
        %v811 = vadd.f32 %v794, %v809
        %s812 = scalar_lea.vmem %s443, 88 [#allocation4]
        %v813 = vld [vmem:[%s812] sm:$0xf]
        %v814 = vld [vmem:[%s812 + $0x4] sm:$0xf]
        %v815 = vunpack.c.l.bf16 %v813
        %v816 = vunpack.c.l.bf16 %v814
        %817 = vset.pattern.permute.xlu0 11
        %818 = vperm.xlu0 %817, %v624
        %v819 = vpop.permute.xlu0 %818
        %821 = vset.pattern.permute.xlu0 11
        %822 = vperm.xlu0 %821, %v625
        %v823 = vpop.permute.xlu0 %822
        %v825 = vmul.f32 %v819, %v815
        %v826 = vmul.f32 %v823, %v816
        %v827 = vadd.f32 %v810, %v825
        %v828 = vadd.f32 %v811, %v826
        %s829 = scalar_lea.vmem %s443, 96 [#allocation4]
        %v830 = vld [vmem:[%s829] sm:$0xf]
        %v831 = vld [vmem:[%s829 + $0x4] sm:$0xf]
        %v832 = vunpack.c.l.bf16 %v830
        %v833 = vunpack.c.l.bf16 %v831
        %834 = vset.pattern.permute.xlu0 12
        %835 = vperm.xlu0 %834, %v624
        %v836 = vpop.permute.xlu0 %835
        %838 = vset.pattern.permute.xlu0 12
        %839 = vperm.xlu0 %838, %v625
        %v840 = vpop.permute.xlu0 %839
        %v842 = vmul.f32 %v836, %v832
        %v843 = vmul.f32 %v840, %v833
        %v844 = vadd.f32 %v827, %v842
        %v845 = vadd.f32 %v828, %v843
        %s846 = scalar_lea.vmem %s443, 104 [#allocation4]
        %v847 = vld [vmem:[%s846] sm:$0xf]
        %v848 = vld [vmem:[%s846 + $0x4] sm:$0xf]
        %v849 = vunpack.c.l.bf16 %v847
        %v850 = vunpack.c.l.bf16 %v848
        %851 = vset.pattern.permute.xlu0 13
        %852 = vperm.xlu0 %851, %v624
        %v853 = vpop.permute.xlu0 %852
        %855 = vset.pattern.permute.xlu0 13
        %856 = vperm.xlu0 %855, %v625
        %v857 = vpop.permute.xlu0 %856
        %v859 = vmul.f32 %v853, %v849
        %v860 = vmul.f32 %v857, %v850
        %v861 = vadd.f32 %v844, %v859
        %v862 = vadd.f32 %v845, %v860
        %s863 = scalar_lea.vmem %s443, 112 [#allocation4]
        %v864 = vld [vmem:[%s863] sm:$0xf]
        %v865 = vld [vmem:[%s863 + $0x4] sm:$0xf]
        %v866 = vunpack.c.l.bf16 %v864
        %v867 = vunpack.c.l.bf16 %v865
        %868 = vset.pattern.permute.xlu0 14
        %869 = vperm.xlu0 %868, %v624
        %v870 = vpop.permute.xlu0 %869
        %872 = vset.pattern.permute.xlu0 14
        %873 = vperm.xlu0 %872, %v625
        %v874 = vpop.permute.xlu0 %873
        %v876 = vmul.f32 %v870, %v866
        %v877 = vmul.f32 %v874, %v867
        %v878 = vadd.f32 %v861, %v876
        %v879 = vadd.f32 %v862, %v877
        %s880 = scalar_lea.vmem %s443, 120 [#allocation4]
        %v881 = vld [vmem:[%s880] sm:$0xf]
        %v882 = vld [vmem:[%s880 + $0x4] sm:$0xf]
        %v883 = vunpack.c.l.bf16 %v881
        %v884 = vunpack.c.l.bf16 %v882
        %885 = vset.pattern.permute.xlu0 15
        %886 = vperm.xlu0 %885, %v624
        %v887 = vpop.permute.xlu0 %886
        %889 = vset.pattern.permute.xlu0 15
        %890 = vperm.xlu0 %889, %v625
        %v891 = vpop.permute.xlu0 %890
        %v893 = vmul.f32 %v887, %v883
        %v894 = vmul.f32 %v891, %v884
        %v895 = vadd.f32 %v878, %v893
        %v896 = vadd.f32 %v879, %v894
        %v897 = vld [vmem:[%s450] sm:$0xff]
        %v898 = vld [vmem:[%s450 + $0x8] sm:$0xff]
        %v899 = vmul.f32 %v895, %v897
        %v900 = vmul.f32 %v896, %v898
        %s901 = smul.u32 %s21, 128
        %v902 = vlaneseq
        %v903 = vand.u32 %v902, 127
        %v904 = vstv %s901
        %v905 = vadd.s32 %v904, %v903
        %vm906 = vcmp.lt.s32.totalorder %v905, 200
        %v907 = vsel %vm906, %v899, -1e+30
        %v908 = vsel %vm906, %v900, -1e+30
        %v909 = vmul.f32 %v907, 1.442695
        %v910 = vpow.pop %v909
        %v911 = vmul.f32 %v908, 1.442695
        %v912 = vpow.pop %v911
        %v913 = vld [vmem:[#allocation3] sm:$0xff]
        %v914 = vld [vmem:[#allocation3 + $0x8] sm:$0xff]
        %915 = vadd.xlane.f32.xlu0 %v910
        %v916 = vpop.xlane.xlu0 %915
        %917 = vadd.xlane.f32.xlu0 %v912
        %v918 = vpop.xlane.xlu0 %917
        %v919 = vadd.f32 %v913, %v916
        %v920 = vadd.f32 %v914, %v918
        %vm921 = vcmask 7168
        %922 = vst.msk [vmem:[#allocation3] sm:$0xff] %vm921, %v919
        %923 = vst.msk [vmem:[#allocation3 + $0x8] sm:$0xff] %vm921, %v920
        %s924 = sshra.s32 %s901, 7
        %s925 = sand.u32 %s901, 127
        %s926 = smul.addr %s924, 8
        %s927 = scalar_lea.vmem %s498, %s926
        %928 = vst [vmem:[%s927] sm:$0xff] %v910
        %929 = vst [vmem:[%s927 + $0x10] sm:$0xff] %v912
        %p930 = scmp.eq.s32.totalorder %s21, 1
        // Predicated region
        $region124: #{youtube_dnn_forward.1} parent=110 // pred_check
          %p931 = pneg %p930
        $region125: #{youtube_dnn_forward.1} parent=110 // pred_check_branch
          %933 = sbr.rel (%p931) target = $region127
        $region126: #{youtube_dnn_forward.1} parent=110 // pred_region
          %v934 = vld [vmem:[%s498] sm:$0xff]
          %v935 = vld [vmem:[%s498 + $0x8] sm:$0xff]
          %v936 = vld [vmem:[%s498 + $0x10] sm:$0xff]
          %v937 = vld [vmem:[%s498 + $0x18] sm:$0xff]
          %v938 = vld [vmem:[#allocation3] sm:$0xff]
          %v939 = vld [vmem:[#allocation3 + $0x8] sm:$0xff]
          %v940 = vrcp.pop %v938
          %v941 = vrcp.pop %v939
          %943 = vset.pattern.permute.xlu0 0
          %944 = vperm.xlu0 %943, %v940
          %v945 = vpop.permute.xlu0 %944
          %948 = vset.pattern.permute.xlu0 0
          %949 = vperm.xlu0 %948, %v941
          %v950 = vpop.permute.xlu0 %949
          %v952 = vmul.f32 %v934, %v945
          %v953 = vmul.f32 %v935, %v945
          %v954 = vmul.f32 %v936, %v950
          %v955 = vmul.f32 %v937, %v950
          %956 = vst [vmem:[%s498] sm:$0xff] %v952
          %957 = vst [vmem:[%s498 + $0x8] sm:$0xff] %v953
          %958 = vst [vmem:[%s498 + $0x10] sm:$0xff] %v954
          %959 = vst [vmem:[%s498 + $0x18] sm:$0xff] %v955
        $region127: #{youtube_dnn_forward.1} parent=110 // pred_fallthru
          _
        %s960 = smul.u32 2, %s20
        %p961 = scmp.lt.s32.totalorder %s960, 3
        %s962 = scalar_select %p961, %s960, 3
        %s963 = smul.addr %s962, 2
        %s964 = smul.addr %s963, 8
        %s965 = scalar_lea.vmem %s5, %s964
        // Predicated region
        $region128: #{youtube_dnn_forward.1} parent=110 // pred_check
          %p966 = pneg %p170
        $region129: #{youtube_dnn_forward.1} parent=110 // pred_check_branch
          %968 = sbr.rel (%p966) target = $region131
        $region130: #{youtube_dnn_forward.1} parent=110 // pred_region
          %s969 = smul.u32 2, %s20
        $region131: #{youtube_dnn_forward.1} parent=110 // pred_fallthru
          _
      $region111: #{youtube_dnn_forward.1} parent=5 // pred_fallthru
        _
      %p970 = scmp.le.s32.totalorder 2, %s11
      // Predicated region
      $region132: #{youtube_dnn_forward.1} parent=5 // pred_check
        %p971 = pneg %p970
      $region133: #{youtube_dnn_forward.1} parent=5 // pred_check_branch
        %973 = sbr.rel (%p971) target = $region135
      $region134: #{youtube_dnn_forward.1} parent=5 // pred_region
        %s974 = ssub.s32 %s11, 2
        // Predicated region
        $region136: #{youtube_dnn_forward.1} parent=134 // pred_check
          %p975 = pneg %p176
        $region137: #{youtube_dnn_forward.1} parent=134 // pred_check_branch
          %977 = sbr.rel (%p975) target = $region139
        $region138: #{youtube_dnn_forward.1} parent=134 // pred_region
          %s978 = smul.u32 2, %s22
          %p979 = scmp.lt.s32.totalorder %s978, 3
          %s980 = scalar_select %p979, %s978, 3
          %s981 = smul.addr %s980, 2
          %s982 = smul.addr %s981, 8
          %s983 = scalar_lea.vmem %s5, %s982
        $region139: #{youtube_dnn_forward.1} parent=134 // pred_fallthru
          _
      $region135: #{youtube_dnn_forward.1} parent=5 // pred_fallthru
        _
    $region6: #{youtube_dnn_forward.1} parent=1 // loop_footer
      %s15 = sadd.s32 1, %s11
    $region7: #{youtube_dnn_forward.1} parent=1 // loop_footer_branch
      %10 = sbr.rel target = $region3
    $region8: #{youtube_dnn_forward.1} parent=1 // loop_exit
      _

</llo_original>
